<compile_context>
chip_gen: v7x
topology: tpu7x:2x2x1
jax: 0.10.0
libtpu: 0.0.40
codegen_flags: <defaults>
</compile_context>

<pallas_src>
import math

import jax
import jax.numpy as jnp
from jax.experimental import pallas as pl
from jax.experimental.pallas import tpu as pltpu

_NEG = -1e9


# --------------------------------------------------------------------------
# Pass 1: per-batch attention + hidden + masked start/end logits.
# --------------------------------------------------------------------------
def logits_kernel(qmask_ref, q_ref, c_ref, cmask_ref, wh_ref, bh_ref, wse_ref,
                  se_ref, start_col_ref):
    q = q_ref[0]                                   # [Qp, H] f32
    c = c_ref[0]                                   # [Cp, H] f32
    hdim = q.shape[-1]

    q_b = q.astype(jnp.bfloat16)
    qneg = (1.0 - qmask_ref[...]) * _NEG           # [1, Qp]  (question padding)
    cneg = (1.0 - cmask_ref[0]) * _NEG             # [Cp, 1]  (context padding)

    # --- cross-attention: context tokens attend over question tokens ---
    scores = jnp.dot(c.astype(jnp.bfloat16), q_b.T,
                     preferred_element_type=jnp.float32)         # [Cp, Qp]
    scores = scores * (1.0 / math.sqrt(hdim)) + qneg
    smax = jnp.max(scores, axis=-1, keepdims=True)
    e = jnp.exp(scores - smax)
    attn = e * pl.reciprocal(jnp.sum(e, axis=-1, keepdims=True), approx=True)
    attended = jnp.dot(attn.astype(jnp.bfloat16), q_b,
                       preferred_element_type=jnp.float32)       # [Cp, H]

    # --- fused hidden state ---
    fused = (c + attended).astype(jnp.bfloat16)
    h = jnp.tanh(jnp.dot(fused, wh_ref[...],
                         preferred_element_type=jnp.float32) + bh_ref[...])

    # --- start / end heads (packed as [H, 2]) + context mask penalty ---
    logits = jnp.dot(h.astype(jnp.bfloat16), wse_ref[...],
                     preferred_element_type=jnp.float32)         # [Cp, 2]
    logits = logits + cneg                                       # masked

    start_col_ref[0] = logits[:, 0:1]          # [Cp, 1] column copy for pass 2
    se_ref[0] = logits.T                       # [2, Cp] lane-dense start/end


# --------------------------------------------------------------------------
# Pass 2: span outer-sum, tiled over the start (row) axis.
# --------------------------------------------------------------------------
def span_kernel(start_col_ref, se_ref, span_ref):
    start_col = start_col_ref[0]               # [TC, 1] f32
    end_row = se_ref[0][1:2, :]                # [1, Cp] f32
    span_ref[0] = (start_col + end_row).astype(span_ref.dtype)   # [TC, Cp] bf16


def _round_up(x, m):
    return ((x + m - 1) // m) * m


def qa_forward(question_features, context_features, attention_mask, params,
               *, span_tile=128):
    """Pallas QA head forward.

    question_features: [B, Q, H] float32
    context_features:  [B, C, H] float32
    attention_mask:    [B, C] (1 = valid, 0 = pad) or None
    returns dict(start_logits [B,C] f32, end_logits [B,C] f32,
                 span_logits [B,C,C] bf16)
    """
    assert span_tile % 128 == 0
    B, Q, H = question_features.shape
    _, C, _ = context_features.shape
    if attention_mask is None:
        attention_mask = jnp.ones((B, C), jnp.float32)

    Qp = max(_round_up(Q, 128), 128)
    Cp = max(_round_up(C, span_tile), 128)
    TC = span_tile

    q = question_features.astype(jnp.float32)
    c = context_features.astype(jnp.float32)
    amask = attention_mask.astype(jnp.float32)
    if Qp != Q:
        q = jnp.pad(q, ((0, 0), (0, Qp - Q), (0, 0)))
    if Cp != C:
        c = jnp.pad(c, ((0, 0), (0, Cp - C), (0, 0)))
        amask = jnp.pad(amask, ((0, 0), (0, Cp - C)))

    qmask = (jnp.arange(Qp) < Q).astype(jnp.float32).reshape(1, Qp)
    cmask_col = amask.reshape(B, Cp, 1)

    wh, bh, wse = params["wh"], params["bh"], params["wse"]

    # ---------------- pass 1: start/end logits ----------------
    se, start_col = pl.pallas_call(
        logits_kernel,
        out_shape=(
            jax.ShapeDtypeStruct((B, 2, Cp), jnp.float32),   # packed start/end
            jax.ShapeDtypeStruct((B, Cp, 1), jnp.float32),   # start as column
        ),
        grid_spec=pltpu.PrefetchScalarGridSpec(
            num_scalar_prefetch=0,
            grid=(B,),
            in_specs=[
                pl.BlockSpec((1, Qp), lambda b: (0, 0)),        # question mask
                pl.BlockSpec((1, Qp, H), lambda b: (b, 0, 0)),  # question
                pl.BlockSpec((1, Cp, H), lambda b: (b, 0, 0)),  # context
                pl.BlockSpec((1, Cp, 1), lambda b: (b, 0, 0)),  # context mask
                pl.BlockSpec((H, H), lambda b: (0, 0)),         # Wh (bf16)
                pl.BlockSpec((1, H), lambda b: (0, 0)),         # bh
                pl.BlockSpec((H, 2), lambda b: (0, 0)),         # Wse (bf16)
            ],
            out_specs=[
                pl.BlockSpec((1, 2, Cp), lambda b: (b, 0, 0)),
                pl.BlockSpec((1, Cp, 1), lambda b: (b, 0, 0)),
            ],
        ),
        compiler_params=pltpu.CompilerParams(
            dimension_semantics=("parallel",),
            vmem_limit_bytes=48 * 1024 * 1024),
    )(qmask, q, c, cmask_col, wh, bh, wse)

    # ---------------- pass 2: tiled span outer-sum ----------------
    n_ct = Cp // TC
    span = pl.pallas_call(
        span_kernel,
        out_shape=jax.ShapeDtypeStruct((B, Cp, Cp), jnp.bfloat16),
        grid_spec=pltpu.PrefetchScalarGridSpec(
            num_scalar_prefetch=0,
            grid=(B, n_ct),
            in_specs=[
                pl.BlockSpec((1, TC, 1), lambda b, i: (b, i, 0)),  # start tile
                pl.BlockSpec((1, 2, Cp), lambda b, i: (b, 0, 0)),  # start/end
            ],
            out_specs=pl.BlockSpec((1, TC, Cp), lambda b, i: (b, i, 0)),
        ),
        compiler_params=pltpu.CompilerParams(
            dimension_semantics=("parallel", "parallel")),
    )(start_col, se)

    return {
        "start_logits": se[:, 0, :C],
        "end_logits": se[:, 1, :C],
        "span_logits": span[:, :C, :C],   # bf16 (halves O(C^2) writeback)
    }


def init_params(hidden_dim, key):
    """Deterministic synthetic parameters (no checkpoint load)."""
    k1, k2, k3 = jax.random.split(key, 3)
    scale = 1.0 / math.sqrt(hidden_dim)
    return {
        "wh": (jax.random.normal(k1, (hidden_dim, hidden_dim), jnp.float32)
               * scale).astype(jnp.bfloat16),
        "bh": jax.random.normal(k2, (1, hidden_dim), jnp.float32) * 0.01,
        "wse": (jax.random.normal(k3, (hidden_dim, 2), jnp.float32)
                * scale).astype(jnp.bfloat16),
    }


def qa_reference(q, c, mask, params):
    """Pure-JAX reference matching the kernel's bf16 operand rounding."""
    wh = params["wh"].astype(jnp.float32)
    bh = params["bh"]
    wse = params["wse"].astype(jnp.float32)
    H = q.shape[-1]
    qb = q.astype(jnp.bfloat16).astype(jnp.float32)
    cb = c.astype(jnp.bfloat16).astype(jnp.float32)
    scores = jnp.einsum("bch,bqh->bcq", cb, qb) / math.sqrt(H)
    attn = jax.nn.softmax(scores, axis=-1)
    attended = jnp.einsum(
        "bcq,bqh->bch", attn.astype(jnp.bfloat16).astype(jnp.float32), qb)
    fused = (c + attended).astype(jnp.bfloat16).astype(jnp.float32)
    h = jnp.tanh(jnp.einsum("bch,hk->bck", fused, wh) + bh)
    logits = jnp.einsum(
        "bch,hk->bck", h.astype(jnp.bfloat16).astype(jnp.float32), wse)
    logits = logits + (1.0 - mask)[:, :, None] * _NEG
    start, end = logits[..., 0], logits[..., 1]
    span = start[:, :, None] + end[:, None, :]
    return start, end, span


# TODO(synk): compute_loss / compute_metrics / predict (argmax + span-length
# fixup loop) are abstract / host-side post-processing on the logits and are
# intentionally not part of the Pallas kernels.

if __name__ == "__main__":
    B, Q, C, H = 2, 8, 256, 128
    key = jax.random.PRNGKey(0)
    kq, kc, kp = jax.random.split(key, 3)

    question_features = jax.random.normal(kq, (B, Q, H), jnp.float32)
    context_features = jax.random.normal(kc, (B, C, H), jnp.float32)
    # last 32 context tokens of batch element 1 are padding
    attention_mask = jnp.ones((B, C), jnp.float32).at[1, C - 32:].set(0.0)

    params = init_params(H, kp)

    out = qa_forward(question_features, context_features, attention_mask, params)
    jax.block_until_ready(out)

    assert out["start_logits"].shape == (B, C)
    assert out["end_logits"].shape == (B, C)
    assert out["span_logits"].shape == (B, C, C)

    # Numerical sanity check against a bf16-aware pure-JAX reference,
    # restricted to valid (unmasked) positions.
    ref_start, ref_end, ref_span = qa_reference(
        question_features, context_features, attention_mask, params)
    valid = (attention_mask > 0.5).astype(jnp.float32)
    err_s = float(jnp.max(jnp.abs(out["start_logits"] - ref_start) * valid))
    err_e = float(jnp.max(jnp.abs(out["end_logits"] - ref_end) * valid))
    span_valid = valid[:, :, None] * valid[:, None, :]
    err_sp = float(jnp.max(
        jnp.abs(out["span_logits"].astype(jnp.float32) - ref_span) * span_valid))
    assert err_s < 0.2 and err_e < 0.2 and err_sp < 0.25, (err_s, err_e, err_sp)

    print("KERNEL_OK")
</pallas_src>

<mosaic_0001>
module attributes {stable_mosaic.version = 11 : i64} {
  func.func @logits_kernel(%arg0: i32, %arg1: memref<1x128xf32, #tpu.memory_space<vmem>>, %arg2: memref<1x128x128xf32, #tpu.memory_space<vmem>>, %arg3: memref<1x256x128xf32, #tpu.memory_space<vmem>>, %arg4: memref<1x256x1xf32, #tpu.memory_space<vmem>>, %arg5: memref<128x128xbf16, #tpu.memory_space<vmem>>, %arg6: memref<1x128xf32, #tpu.memory_space<vmem>>, %arg7: memref<128x2xbf16, #tpu.memory_space<vmem>>, %arg8: memref<1x2x256xf32, #tpu.memory_space<vmem>>, %arg9: memref<1x256x1xf32, #tpu.memory_space<vmem>>) attributes {dimension_semantics = [#tpu.dimension_semantics<parallel>], iteration_bounds = array<i64: 2>, scalar_prefetch = 0 : i64, scratch_operands = 0 : i64, tpu.core_type = #tpu.core_type<tc>, window_params = [{pipeline_mode = #tpu.pipeline_mode<synchronous>, transform_indices = @transform_0, window_bounds = array<i64: 1, 128>}, {transform_indices = @transform_1, window_bounds = array<i64: 1, 128, 128>}, {transform_indices = @transform_2, window_bounds = array<i64: 1, 256, 128>}, {transform_indices = @transform_3, window_bounds = array<i64: 1, 256, 1>}, {pipeline_mode = #tpu.pipeline_mode<synchronous>, transform_indices = @transform_4, window_bounds = array<i64: 128, 128>}, {pipeline_mode = #tpu.pipeline_mode<synchronous>, transform_indices = @transform_5, window_bounds = array<i64: 1, 128>}, {pipeline_mode = #tpu.pipeline_mode<synchronous>, transform_indices = @transform_6, window_bounds = array<i64: 128, 2>}, {transform_indices = @transform_7, window_bounds = array<i64: 1, 2, 256>}, {transform_indices = @transform_8, window_bounds = array<i64: 1, 256, 1>}]} {
    %c0 = arith.constant 0 : index
    %c0_0 = arith.constant 0 : index
    %c0_1 = arith.constant 0 : index
    %0 = vector.load %arg2[%c0, %c0_0, %c0_1] : memref<1x128x128xf32, #tpu.memory_space<vmem>>, vector<1x128x128xf32>
    %1 = vector.shape_cast %0 : vector<1x128x128xf32> to vector<128x128xf32>
    %c0_2 = arith.constant 0 : index
    %c0_3 = arith.constant 0 : index
    %c0_4 = arith.constant 0 : index
    %2 = vector.load %arg3[%c0_2, %c0_3, %c0_4] : memref<1x256x128xf32, #tpu.memory_space<vmem>>, vector<1x256x128xf32>
    %3 = vector.shape_cast %2 : vector<1x256x128xf32> to vector<256x128xf32>
    %4 = arith.truncf %1 : vector<128x128xf32> to vector<128x128xbf16>
    %c0_5 = arith.constant 0 : index
    %c0_6 = arith.constant 0 : index
    %5 = vector.load %arg1[%c0_5, %c0_6] : memref<1x128xf32, #tpu.memory_space<vmem>>, vector<1x128xf32>
    %cst = arith.constant 1.000000e+00 : f32
    %6 = vector.broadcast %cst : f32 to vector<1x128xf32>
    %7 = arith.subf %6, %5 : vector<1x128xf32>
    %cst_7 = arith.constant -1.000000e+09 : f32
    %8 = vector.broadcast %cst_7 : f32 to vector<1x128xf32>
    %9 = arith.mulf %7, %8 : vector<1x128xf32>
    %c0_8 = arith.constant 0 : index
    %c0_9 = arith.constant 0 : index
    %c0_10 = arith.constant 0 : index
    %10 = vector.load %arg4[%c0_8, %c0_9, %c0_10] : memref<1x256x1xf32, #tpu.memory_space<vmem>>, vector<1x256x1xf32>
    %11 = vector.shape_cast %10 : vector<1x256x1xf32> to vector<256x1xf32>
    %cst_11 = arith.constant 1.000000e+00 : f32
    %12 = vector.broadcast %cst_11 : f32 to vector<256x1xf32>
    %13 = arith.subf %12, %11 : vector<256x1xf32>
    %cst_12 = arith.constant -1.000000e+09 : f32
    %14 = vector.broadcast %cst_12 : f32 to vector<256x1xf32>
    %15 = arith.mulf %13, %14 : vector<256x1xf32>
    %16 = arith.truncf %3 : vector<256x128xf32> to vector<256x128xbf16>
    %17 = tpu.transpose %4, [1, 0] : vector<128x128xbf16> -> vector<128x128xbf16>
    %cst_13 = arith.constant dense<0.000000e+00> : vector<256x128xf32>
    %18 = tpu.matmul %16, %17, %cst_13 {dimension_numbers = #tpu.dot_dimension_numbers<[1], [0], [0], [1], [0, 0, 1, 1], [], []>} : vector<256x128xbf16>, vector<128x128xbf16>, vector<256x128xf32> -> vector<256x128xf32>
    %cst_14 = arith.constant 0.0883883461 : f32
    %19 = vector.broadcast %cst_14 : f32 to vector<256x128xf32>
    %20 = arith.mulf %18, %19 : vector<256x128xf32>
    %21 = vector.broadcast %9 : vector<1x128xf32> to vector<256x128xf32>
    %22 = arith.addf %20, %21 : vector<256x128xf32>
    %cst_15 = arith.constant dense<0xFF800000> : vector<256xf32>
    %23 = vector.multi_reduction <maximumf>, %22, %cst_15 [1] : vector<256x128xf32> to vector<256xf32>
    %24 = vector.shape_cast %23 : vector<256xf32> to vector<256x1xf32>
    %25 = vector.broadcast %24 : vector<256x1xf32> to vector<256x128xf32>
    %26 = arith.subf %22, %25 : vector<256x128xf32>
    %27 = math.exp %26 : vector<256x128xf32>
    %cst_16 = arith.constant dense<0.000000e+00> : vector<256xf32>
    %28 = vector.multi_reduction <add>, %27, %cst_16 [1] : vector<256x128xf32> to vector<256xf32>
    %29 = vector.shape_cast %28 : vector<256xf32> to vector<256x1xf32>
    %30 = tpu.reciprocal %29 {approx = true} : vector<256x1xf32> -> vector<256x1xf32>
    %31 = vector.broadcast %30 : vector<256x1xf32> to vector<256x128xf32>
    %32 = arith.mulf %27, %31 : vector<256x128xf32>
    %33 = arith.truncf %32 : vector<256x128xf32> to vector<256x128xbf16>
    %cst_17 = arith.constant dense<0.000000e+00> : vector<256x128xf32>
    %34 = tpu.matmul %33, %4, %cst_17 {dimension_numbers = #tpu.dot_dimension_numbers<[1], [0], [0], [1], [0, 0, 1, 1], [], []>} : vector<256x128xbf16>, vector<128x128xbf16>, vector<256x128xf32> -> vector<256x128xf32>
    %35 = arith.addf %3, %34 : vector<256x128xf32>
    %36 = arith.truncf %35 : vector<256x128xf32> to vector<256x128xbf16>
    %c0_18 = arith.constant 0 : index
    %c0_19 = arith.constant 0 : index
    %37 = vector.load %arg5[%c0_18, %c0_19] : memref<128x128xbf16, #tpu.memory_space<vmem>>, vector<128x128xbf16>
    %cst_20 = arith.constant dense<0.000000e+00> : vector<256x128xf32>
    %38 = tpu.matmul %36, %37, %cst_20 {dimension_numbers = #tpu.dot_dimension_numbers<[1], [0], [0], [1], [0, 0, 1, 1], [], []>} : vector<256x128xbf16>, vector<128x128xbf16>, vector<256x128xf32> -> vector<256x128xf32>
    %c0_21 = arith.constant 0 : index
    %c0_22 = arith.constant 0 : index
    %39 = vector.load %arg6[%c0_21, %c0_22] : memref<1x128xf32, #tpu.memory_space<vmem>>, vector<1x128xf32>
    %40 = vector.broadcast %39 : vector<1x128xf32> to vector<256x128xf32>
    %41 = arith.addf %38, %40 : vector<256x128xf32>
    %42 = math.tanh %41 : vector<256x128xf32>
    %43 = arith.truncf %42 : vector<256x128xf32> to vector<256x128xbf16>
    %c0_23 = arith.constant 0 : index
    %c0_24 = arith.constant 0 : index
    %44 = vector.load %arg7[%c0_23, %c0_24] : memref<128x2xbf16, #tpu.memory_space<vmem>>, vector<128x2xbf16>
    %cst_25 = arith.constant dense<0.000000e+00> : vector<256x2xf32>
    %45 = tpu.matmul %43, %44, %cst_25 {dimension_numbers = #tpu.dot_dimension_numbers<[1], [0], [0], [1], [0, 0, 1, 1], [], []>} : vector<256x128xbf16>, vector<128x2xbf16>, vector<256x2xf32> -> vector<256x2xf32>
    %46 = vector.broadcast %15 : vector<256x1xf32> to vector<256x2xf32>
    %47 = arith.addf %45, %46 : vector<256x2xf32>
    %48 = vector.extract_strided_slice %47 {offsets = [0, 0], sizes = [256, 1], strides = [1, 1]} : vector<256x2xf32> to vector<256x1xf32>
    %c0_26 = arith.constant 0 : index
    %c0_27 = arith.constant 0 : index
    %c0_28 = arith.constant 0 : index
    %49 = vector.load %arg9[%c0_26, %c0_27, %c0_28] : memref<1x256x1xf32, #tpu.memory_space<vmem>>, vector<1x256x1xf32>
    %50 = vector.shape_cast %49 : vector<1x256x1xf32> to vector<256x1xf32>
    %51 = vector.shape_cast %48 : vector<256x1xf32> to vector<1x256x1xf32>
    tpu.vector_store %arg9[%c0_26, %c0_27, %c0_28], %51 {strides = array<i32>} : memref<1x256x1xf32, #tpu.memory_space<vmem>>, vector<1x256x1xf32>,
    %52 = tpu.transpose %47, [1, 0] : vector<256x2xf32> -> vector<2x256xf32>
    %c0_29 = arith.constant 0 : index
    %c0_30 = arith.constant 0 : index
    %c0_31 = arith.constant 0 : index
    %53 = vector.load %arg8[%c0_29, %c0_30, %c0_31] : memref<1x2x256xf32, #tpu.memory_space<vmem>>, vector<1x2x256xf32>
    %54 = vector.shape_cast %53 : vector<1x2x256xf32> to vector<2x256xf32>
    %55 = vector.shape_cast %52 : vector<2x256xf32> to vector<1x2x256xf32>
    tpu.vector_store %arg8[%c0_29, %c0_30, %c0_31], %55 {strides = array<i32>} : memref<1x2x256xf32, #tpu.memory_space<vmem>>, vector<1x2x256xf32>,
    return
  }
  func.func @transform_0(%arg0: i32) -> (i32, i32) {
    %c0_i32 = arith.constant 0 : i32
    %c0_i32_0 = arith.constant 0 : i32
    %c0_i32_1 = arith.constant 0 : i32
    return %c0_i32, %c0_i32_0 : i32, i32
  }
  func.func @transform_1(%arg0: i32) -> (i32, i32, i32) {
    %c0_i32 = arith.constant 0 : i32
    %c0_i32_0 = arith.constant 0 : i32
    %c0_i32_1 = arith.constant 0 : i32
    return %arg0, %c0_i32, %c0_i32_0 : i32, i32, i32
  }
  func.func @transform_2(%arg0: i32) -> (i32, i32, i32) {
    %c0_i32 = arith.constant 0 : i32
    %c0_i32_0 = arith.constant 0 : i32
    %c0_i32_1 = arith.constant 0 : i32
    return %arg0, %c0_i32, %c0_i32_0 : i32, i32, i32
  }
  func.func @transform_3(%arg0: i32) -> (i32, i32, i32) {
    %c0_i32 = arith.constant 0 : i32
    %c0_i32_0 = arith.constant 0 : i32
    %c0_i32_1 = arith.constant 0 : i32
    return %arg0, %c0_i32, %c0_i32_0 : i32, i32, i32
  }
  func.func @transform_4(%arg0: i32) -> (i32, i32) {
    %c0_i32 = arith.constant 0 : i32
    %c0_i32_0 = arith.constant 0 : i32
    %c0_i32_1 = arith.constant 0 : i32
    return %c0_i32, %c0_i32_0 : i32, i32
  }
  func.func @transform_5(%arg0: i32) -> (i32, i32) {
    %c0_i32 = arith.constant 0 : i32
    %c0_i32_0 = arith.constant 0 : i32
    %c0_i32_1 = arith.constant 0 : i32
    return %c0_i32, %c0_i32_0 : i32, i32
  }
  func.func @transform_6(%arg0: i32) -> (i32, i32) {
    %c0_i32 = arith.constant 0 : i32
    %c0_i32_0 = arith.constant 0 : i32
    %c0_i32_1 = arith.constant 0 : i32
    return %c0_i32, %c0_i32_0 : i32, i32
  }
  func.func @transform_7(%arg0: i32) -> (i32, i32, i32) {
    %c0_i32 = arith.constant 0 : i32
    %c0_i32_0 = arith.constant 0 : i32
    %c0_i32_1 = arith.constant 0 : i32
    return %arg0, %c0_i32, %c0_i32_0 : i32, i32, i32
  }
  func.func @transform_8(%arg0: i32) -> (i32, i32, i32) {
    %c0_i32 = arith.constant 0 : i32
    %c0_i32_0 = arith.constant 0 : i32
    %c0_i32_1 = arith.constant 0 : i32
    return %arg0, %c0_i32, %c0_i32_0 : i32, i32, i32
  }
}

</mosaic_0001>

<llo_original>
// kernel: tpu_custom_call.1
$region0: #{tpu_custom_call.1}
  #allocation0 [shape = 'u32[]', space=smem, size = 0x4, offset = 0x4, fixed_abs, tag = 'smem constant byte address 0x4 - core index']
  #allocation1 [shape = 'u32[144,128]{1,0:T(1,128)}', space=vmem, size = 0x12000, scoped, tag = 'internal scratch']
  %s0 = inlined_call_operand.vmem [shape: f32[1,128], index: 0, kind: input, shape index: {}]
  %s1 = inlined_call_operand.hbm [shape: f32[2,128,128], index: 1, kind: input, shape index: {}]
  %s2 = inlined_call_operand.vmem [shape: f32[2,256,128], index: 2, kind: input, shape index: {}]
  %s3 = inlined_call_operand.vmem [shape: f32[2,256,1], index: 3, kind: input, shape index: {}]
  %s4 = inlined_call_operand.vmem [shape: bf16[128,128], index: 4, kind: input, shape index: {}]
  %s5 = inlined_call_operand.vmem [shape: f32[1,128], index: 5, kind: input, shape index: {}]
  %s6 = inlined_call_operand.vmem [shape: bf16[128,2], index: 6, kind: input, shape index: {}]
  %s7 = inlined_call_operand.hbm [shape: f32[2,2,256], index: 7, kind: output, shape index: {0}]
  %s8 = inlined_call_operand.vmem [shape: f32[2,256,1], index: 8, kind: output, shape index: {1}]
  %9 = xla_tuple %s7, %s8
  %s10 = sld [smem:[#allocation0]]
  $region73: #{tpu_custom_call.1} parent=0
    _
  %s12 = ssub.s32 1, %s10
  %s13 = scalar_select 0, %s12, %s10
  $region1: #{tpu_custom_call.1} parent=0
    #allocation2 [shape = 'u8[131072]{0}', space=vmem, size = 0x20000, scoped, tag = 'input window, operand 1']
    #allocation3 [shape = 's32[2]{0}', space=sflag, size = 0x8, scoped, tag = 'scoped memory for tpu_custom_call.1']
    #allocation4 [shape = 's32[2]{0}', space=sflag, size = 0x8, scoped, tag = 'scoped memory for tpu_custom_call.1']
    #allocation5 [shape = 'u8[4096]{0}', space=vmem, size = 0x1000, scoped, tag = 'output window, operand 0']
    %14 = vsyncpa [#allocation3], 0
    %s15 = scalar_lea.sflag [#allocation3], 1
    %16 = vsyncpa %s15, 0
    %17 = vsyncpa [#allocation4], 0
    %s18 = scalar_lea.sflag [#allocation4], 1
    %19 = vsyncpa %s18, 0
    loop: start=0, step=1, limit=4
    $region2: #{tpu_custom_call.1} parent=1 // loop_pre_header
      _
    $region3: #{tpu_custom_call.1} parent=1 // loop_header
      %s21 = sphi 0, %s25
      %p22 = scmp.ge.s32.totalorder %s21, 4
      %s29 = sphi 0, %s29
      %s31 = sphi 0, %s29
      %s32 = sphi 0, %s31
      %s46 = sphi 0, %s32
      %s52 = sphi 0, %s54
      %s55 = sphi 0, %s52
      %s56 = sphi 0, %s55
      %s72 = sphi 0, %s56
      %s78 = sphi 0, %s80
      %s81 = sphi 0, %s78
      %s82 = sphi 0, %s81
      %s98 = sphi 0, %s82
      %s104 = sphi 0, %s106
      %s107 = sphi 0, %s104
      %s108 = sphi 0, %s107
      %s124 = sphi 0, %s108
      %s128 = sphi 0, %s128
      %s130 = sphi 0, %s128
      %s131 = sphi 0, %s130
      %s145 = sphi 0, %s131
      %s149 = sphi 0, %s149
      %s151 = sphi 0, %s149
      %s152 = sphi 0, %s151
      %s166 = sphi 0, %s152
      %s170 = sphi 0, %s170
      %s172 = sphi 0, %s170
      %s173 = sphi 0, %s172
      %s187 = sphi 0, %s173
      %s193 = sphi 0, %s195
      %s196 = sphi 0, %s193
      %s197 = sphi 0, %s196
      %s213 = sphi 0, %s197
      %s219 = sphi 0, %s221
      %s222 = sphi 0, %s219
      %s223 = sphi 0, %s222
      %s239 = sphi 0, %s223
    $region4: #{tpu_custom_call.1} parent=1 // loop_header_branch
      %24 = sbr.rel (%p22) target = $region8
    $region5: #{tpu_custom_call.1} parent=1 // loop_body
      %s26 = ssub.s32 %s21, 1
      %s27 = ssub.s32 %s21, 2
      %s28 = sadd.s32 %s21, 1
      %s30 = sadd.s32 %s29, 1
      %p33 = scmp.eq.s32.totalorder %s21, 1
      %p34 = scmp.ne.s32.totalorder %s29, %s31
      %p35 = scmp.eq.s32.totalorder %s21, 0
      %p36 = por %p34, %p35
      %p37 = scmp.ne.s32.totalorder %s29, %s31
      %p38 = scmp.eq.s32.totalorder %s26, 1
      %p39 = por %p37, %p38
      %p40 = scmp.ne.s32.totalorder %s31, %s32
      %p41 = scmp.eq.s32.totalorder %s26, 0
      %p42 = por %p40, %p41
      %p43 = scmp.ne.s32.totalorder %s31, %s32
      %p44 = scmp.eq.s32.totalorder %s27, 1
      %p45 = por %p43, %p44
      %p47 = scmp.ne.s32.totalorder %s32, %s46
      %p48 = scmp.eq.s32.totalorder %s27, 0
      %p49 = por %p47, %p48
      %s50 = ssub.s32 %s21, %s28
      %p51 = scmp.eq.s32.totalorder %s50, 0
      %s53 = sadd.s32 %s52, 1
      %s54 = scalar_select %p51, %s52, %s53
      %p57 = pneg %p51
      %p58 = scmp.eq.s32.totalorder %s21, 1
      %p59 = por %p57, %p58
      %p60 = scmp.ne.s32.totalorder %s52, %s55
      %p61 = scmp.eq.s32.totalorder %s21, 0
      %p62 = por %p60, %p61
      %p63 = scmp.ne.s32.totalorder %s52, %s55
      %p64 = scmp.eq.s32.totalorder %s26, 1
      %p65 = por %p63, %p64
      %p66 = scmp.ne.s32.totalorder %s55, %s56
      %p67 = scmp.eq.s32.totalorder %s26, 0
      %p68 = por %p66, %p67
      %p69 = scmp.ne.s32.totalorder %s55, %s56
      %p70 = scmp.eq.s32.totalorder %s27, 1
      %p71 = por %p69, %p70
      %p73 = scmp.ne.s32.totalorder %s56, %s72
      %p74 = scmp.eq.s32.totalorder %s27, 0
      %p75 = por %p73, %p74
      %s76 = ssub.s32 %s21, %s28
      %p77 = scmp.eq.s32.totalorder %s76, 0
      %s79 = sadd.s32 %s78, 1
      %s80 = scalar_select %p77, %s78, %s79
      %p83 = pneg %p77
      %p84 = scmp.eq.s32.totalorder %s21, 1
      %p85 = por %p83, %p84
      %p86 = scmp.ne.s32.totalorder %s78, %s81
      %p87 = scmp.eq.s32.totalorder %s21, 0
      %p88 = por %p86, %p87
      %p89 = scmp.ne.s32.totalorder %s78, %s81
      %p90 = scmp.eq.s32.totalorder %s26, 1
      %p91 = por %p89, %p90
      %p92 = scmp.ne.s32.totalorder %s81, %s82
      %p93 = scmp.eq.s32.totalorder %s26, 0
      %p94 = por %p92, %p93
      %p95 = scmp.ne.s32.totalorder %s81, %s82
      %p96 = scmp.eq.s32.totalorder %s27, 1
      %p97 = por %p95, %p96
      %p99 = scmp.ne.s32.totalorder %s82, %s98
      %p100 = scmp.eq.s32.totalorder %s27, 0
      %p101 = por %p99, %p100
      %s102 = ssub.s32 %s21, %s28
      %p103 = scmp.eq.s32.totalorder %s102, 0
      %s105 = sadd.s32 %s104, 1
      %s106 = scalar_select %p103, %s104, %s105
      %p109 = pneg %p103
      %p110 = scmp.eq.s32.totalorder %s21, 1
      %p111 = por %p109, %p110
      %p112 = scmp.ne.s32.totalorder %s104, %s107
      %p113 = scmp.eq.s32.totalorder %s21, 0
      %p114 = por %p112, %p113
      %p115 = scmp.ne.s32.totalorder %s104, %s107
      %p116 = scmp.eq.s32.totalorder %s26, 1
      %p117 = por %p115, %p116
      %p118 = scmp.ne.s32.totalorder %s107, %s108
      %p119 = scmp.eq.s32.totalorder %s26, 0
      %p120 = por %p118, %p119
      %p121 = scmp.ne.s32.totalorder %s107, %s108
      %p122 = scmp.eq.s32.totalorder %s27, 1
      %p123 = por %p121, %p122
      %p125 = scmp.ne.s32.totalorder %s108, %s124
      %p126 = scmp.eq.s32.totalorder %s27, 0
      %p127 = por %p125, %p126
      %s129 = sadd.s32 %s128, 1
      %p132 = scmp.eq.s32.totalorder %s21, 1
      %p133 = scmp.ne.s32.totalorder %s128, %s130
      %p134 = scmp.eq.s32.totalorder %s21, 0
      %p135 = por %p133, %p134
      %p136 = scmp.ne.s32.totalorder %s128, %s130
      %p137 = scmp.eq.s32.totalorder %s26, 1
      %p138 = por %p136, %p137
      %p139 = scmp.ne.s32.totalorder %s130, %s131
      %p140 = scmp.eq.s32.totalorder %s26, 0
      %p141 = por %p139, %p140
      %p142 = scmp.ne.s32.totalorder %s130, %s131
      %p143 = scmp.eq.s32.totalorder %s27, 1
      %p144 = por %p142, %p143
      %p146 = scmp.ne.s32.totalorder %s131, %s145
      %p147 = scmp.eq.s32.totalorder %s27, 0
      %p148 = por %p146, %p147
      %s150 = sadd.s32 %s149, 1
      %p153 = scmp.eq.s32.totalorder %s21, 1
      %p154 = scmp.ne.s32.totalorder %s149, %s151
      %p155 = scmp.eq.s32.totalorder %s21, 0
      %p156 = por %p154, %p155
      %p157 = scmp.ne.s32.totalorder %s149, %s151
      %p158 = scmp.eq.s32.totalorder %s26, 1
      %p159 = por %p157, %p158
      %p160 = scmp.ne.s32.totalorder %s151, %s152
      %p161 = scmp.eq.s32.totalorder %s26, 0
      %p162 = por %p160, %p161
      %p163 = scmp.ne.s32.totalorder %s151, %s152
      %p164 = scmp.eq.s32.totalorder %s27, 1
      %p165 = por %p163, %p164
      %p167 = scmp.ne.s32.totalorder %s152, %s166
      %p168 = scmp.eq.s32.totalorder %s27, 0
      %p169 = por %p167, %p168
      %s171 = sadd.s32 %s170, 1
      %p174 = scmp.eq.s32.totalorder %s21, 1
      %p175 = scmp.ne.s32.totalorder %s170, %s172
      %p176 = scmp.eq.s32.totalorder %s21, 0
      %p177 = por %p175, %p176
      %p178 = scmp.ne.s32.totalorder %s170, %s172
      %p179 = scmp.eq.s32.totalorder %s26, 1
      %p180 = por %p178, %p179
      %p181 = scmp.ne.s32.totalorder %s172, %s173
      %p182 = scmp.eq.s32.totalorder %s26, 0
      %p183 = por %p181, %p182
      %p184 = scmp.ne.s32.totalorder %s172, %s173
      %p185 = scmp.eq.s32.totalorder %s27, 1
      %p186 = por %p184, %p185
      %p188 = scmp.ne.s32.totalorder %s173, %s187
      %p189 = scmp.eq.s32.totalorder %s27, 0
      %p190 = por %p188, %p189
      %s191 = ssub.s32 %s21, %s28
      %p192 = scmp.eq.s32.totalorder %s191, 0
      %s194 = sadd.s32 %s193, 1
      %s195 = scalar_select %p192, %s193, %s194
      %p198 = pneg %p192
      %p199 = scmp.eq.s32.totalorder %s21, 1
      %p200 = por %p198, %p199
      %p201 = scmp.ne.s32.totalorder %s193, %s196
      %p202 = scmp.eq.s32.totalorder %s21, 0
      %p203 = por %p201, %p202
      %p204 = scmp.ne.s32.totalorder %s193, %s196
      %p205 = scmp.eq.s32.totalorder %s26, 1
      %p206 = por %p204, %p205
      %p207 = scmp.ne.s32.totalorder %s196, %s197
      %p208 = scmp.eq.s32.totalorder %s26, 0
      %p209 = por %p207, %p208
      %p210 = scmp.ne.s32.totalorder %s196, %s197
      %p211 = scmp.eq.s32.totalorder %s27, 1
      %p212 = por %p210, %p211
      %p214 = scmp.ne.s32.totalorder %s197, %s213
      %p215 = scmp.eq.s32.totalorder %s27, 0
      %p216 = por %p214, %p215
      %s217 = ssub.s32 %s21, %s28
      %p218 = scmp.eq.s32.totalorder %s217, 0
      %s220 = sadd.s32 %s219, 1
      %s221 = scalar_select %p218, %s219, %s220
      %p224 = pneg %p218
      %p225 = scmp.eq.s32.totalorder %s21, 1
      %p226 = por %p224, %p225
      %p227 = scmp.ne.s32.totalorder %s219, %s222
      %p228 = scmp.eq.s32.totalorder %s21, 0
      %p229 = por %p227, %p228
      %p230 = scmp.ne.s32.totalorder %s219, %s222
      %p231 = scmp.eq.s32.totalorder %s26, 1
      %p232 = por %p230, %p231
      %p233 = scmp.ne.s32.totalorder %s222, %s223
      %p234 = scmp.eq.s32.totalorder %s26, 0
      %p235 = por %p233, %p234
      %p236 = scmp.ne.s32.totalorder %s222, %s223
      %p237 = scmp.eq.s32.totalorder %s27, 1
      %p238 = por %p236, %p237
      %p240 = scmp.ne.s32.totalorder %s223, %s239
      %p241 = scmp.eq.s32.totalorder %s27, 0
      %p242 = por %p240, %p241
      %p243 = scmp.le.s32.totalorder 1, %s21
      %p244 = scmp.lt.s32.totalorder %s21, 3
      %p245 = pnand %p243, %p244
      %p246 = pneg %p245
      // Predicated region
      $region9: #{tpu_custom_call.1} parent=5 // pred_check
        _
      $region10: #{tpu_custom_call.1} parent=5 // pred_check_branch
        %248 = sbr.rel (%p245) target = $region12
      $region11: #{tpu_custom_call.1} parent=5 // pred_region
        %s249 = ssub.s32 %s21, 1
        // Predicated region
        $region13: #{tpu_custom_call.1} parent=11 // pred_check
          %p250 = pneg %p42
        $region14: #{tpu_custom_call.1} parent=11 // pred_check_branch
          %252 = sbr.rel (%p250) target = $region16
        $region15: #{tpu_custom_call.1} parent=11 // pred_region
          _
        $region16: #{tpu_custom_call.1} parent=11 // pred_fallthru
          _
        // Predicated region
        $region17: #{tpu_custom_call.1} parent=11 // pred_check
          %p253 = pneg %p141
        $region18: #{tpu_custom_call.1} parent=11 // pred_check_branch
          %255 = sbr.rel (%p253) target = $region20
        $region19: #{tpu_custom_call.1} parent=11 // pred_region
          _
        $region20: #{tpu_custom_call.1} parent=11 // pred_fallthru
          _
        // Predicated region
        $region21: #{tpu_custom_call.1} parent=11 // pred_check
          %p256 = pneg %p162
        $region22: #{tpu_custom_call.1} parent=11 // pred_check_branch
          %258 = sbr.rel (%p256) target = $region24
        $region23: #{tpu_custom_call.1} parent=11 // pred_region
          _
        $region24: #{tpu_custom_call.1} parent=11 // pred_fallthru
          _
        // Predicated region
        $region25: #{tpu_custom_call.1} parent=11 // pred_check
          %p259 = pneg %p183
        $region26: #{tpu_custom_call.1} parent=11 // pred_check_branch
          %261 = sbr.rel (%p259) target = $region28
        $region27: #{tpu_custom_call.1} parent=11 // pred_region
          _
        $region28: #{tpu_custom_call.1} parent=11 // pred_fallthru
          _
      $region12: #{tpu_custom_call.1} parent=5 // pred_fallthru
        _
      %p262 = scmp.lt.s32.totalorder %s21, 2
      // Predicated region
      $region29: #{tpu_custom_call.1} parent=5 // pred_check
        %p263 = pneg %p262
      $region30: #{tpu_custom_call.1} parent=5 // pred_check_branch
        %265 = sbr.rel (%p263) target = $region32
      $region31: #{tpu_custom_call.1} parent=5 // pred_region
        // Predicated region
        $region33: #{tpu_custom_call.1} parent=31 // pred_check
          %p266 = pneg %p62
        $region34: #{tpu_custom_call.1} parent=31 // pred_check_branch
          %268 = sbr.rel (%p266) target = $region36
        $region35: #{tpu_custom_call.1} parent=31 // pred_region
          %s269 = sand.u32 %s52, 1
          %s270 = scalar_lea.sflag [#allocation3], %s269
          %s271 = sand.u32 %s52, 1
          %s272 = smul.addr %s271, 128
          %s273 = scalar_lea.vmem [#allocation2], %s272
          %s275 = ssub.s32 2048, 2048
          %276 = vsyncadd %s270, %s275
          %s277 = smul.addr %s21, 16
          %s278 = smul.addr %s277, 128
          %s279 = scalar_lea.hbm %s1, %s278
          %s280 = sshll.u32 %s273, 4
          %s281 = int_to_ptr.vmem [resolvable:$true] %s280
          %286 = dma.hbm_to_vmem [thread:$0]  %s279, 2048, %s281, %s270, 128, 128, 8
        $region36: #{tpu_custom_call.1} parent=31 // pred_fallthru
          _
        // Predicated region
        $region37: #{tpu_custom_call.1} parent=31 // pred_check
          %p287 = pneg %p88
        $region38: #{tpu_custom_call.1} parent=31 // pred_check_branch
          %289 = sbr.rel (%p287) target = $region40
        $region39: #{tpu_custom_call.1} parent=31 // pred_region
          %p290 = scmp.lt.s32.totalorder %s21, 1
          %s291 = scalar_select %p290, %s21, 1
          %s292 = smul.addr %s291, 32
          %s293 = smul.addr %s292, 8
          %s294 = scalar_lea.vmem %s2, %s293
        $region40: #{tpu_custom_call.1} parent=31 // pred_fallthru
          _
        // Predicated region
        $region41: #{tpu_custom_call.1} parent=31 // pred_check
          %p295 = pneg %p114
        $region42: #{tpu_custom_call.1} parent=31 // pred_check_branch
          %297 = sbr.rel (%p295) target = $region44
        $region43: #{tpu_custom_call.1} parent=31 // pred_region
          %p298 = scmp.lt.s32.totalorder %s21, 1
          %s299 = scalar_select %p298, %s21, 1
          %s300 = smul.addr %s299, 32
          %s301 = smul.addr %s300, 8
          %s302 = scalar_lea.vmem %s3, %s301
        $region44: #{tpu_custom_call.1} parent=31 // pred_fallthru
          _
      $region32: #{tpu_custom_call.1} parent=5 // pred_fallthru
        _
      %p303 = scmp.le.s32.totalorder 1, %s21
      %p304 = scmp.lt.s32.totalorder %s21, 3
      %p305 = pnand %p303, %p304
      %p306 = pneg %p305
      // Predicated region
      $region45: #{tpu_custom_call.1} parent=5 // pred_check
        _
      $region46: #{tpu_custom_call.1} parent=5 // pred_check_branch
        %308 = sbr.rel (%p305) target = $region48
      $region47: #{tpu_custom_call.1} parent=5 // pred_region
        %s309 = ssub.s32 %s21, 1
        %s310 = sand.u32 %s55, 1
        %s311 = scalar_lea.sflag [#allocation3], %s310
        %s312 = sand.u32 %s55, 1
        %s313 = smul.addr %s312, 128
        %s314 = scalar_lea.vmem [#allocation2], %s313
        // Predicated region
        $region49: #{tpu_custom_call.1} parent=47 // pred_check
          %p315 = pneg %p68
        $region50: #{tpu_custom_call.1} parent=47 // pred_check_branch
          %317 = sbr.rel (%p315) target = $region52
        $region51: #{tpu_custom_call.1} parent=47 // pred_region
          %318 = dma.done %s311, 2048
        $region52: #{tpu_custom_call.1} parent=47 // pred_fallthru
          _
        %p319 = pneg %p42
        %p320 = pneg %p39
        %s321 = sand.u32 %s55, 1
        %s322 = scalar_lea.sflag [#allocation3], %s321
        %s323 = sand.u32 %s55, 1
        %s324 = smul.addr %s323, 128
        %s325 = scalar_lea.vmem [#allocation2], %s324
        %p326 = pneg %p68
        %p327 = pneg %p65
        %p328 = scmp.lt.s32.totalorder %s26, 1
        %s329 = scalar_select %p328, %s26, 1
        %s330 = smul.addr %s329, 32
        %s331 = smul.addr %s330, 8
        %s332 = scalar_lea.vmem %s2, %s331
        %p333 = pneg %p94
        %p334 = pneg %p91
        %p335 = scmp.lt.s32.totalorder %s26, 1
        %s336 = scalar_select %p335, %s26, 1
        %s337 = smul.addr %s336, 32
        %s338 = smul.addr %s337, 8
        %s339 = scalar_lea.vmem %s3, %s338
        %p340 = pneg %p120
        %p341 = pneg %p117
        %p342 = pneg %p141
        %p343 = pneg %p138
        %p344 = pneg %p162
        %p345 = pneg %p159
        %p346 = pneg %p183
        %p347 = pneg %p180
        %p348 = pneg %p209
        %p349 = pneg %p206
        %s350 = sand.u32 %s196, 1
        %s351 = scalar_lea.sflag [#allocation4], %s350
        %s352 = sand.u32 %s196, 1
        %s353 = smul.addr %s352, 4
        %s354 = scalar_lea.vmem [#allocation5], %s353
        %p355 = pneg %p235
        %p356 = pneg %p232
        %p357 = scmp.lt.s32.totalorder %s26, 1
        %s358 = scalar_select %p357, %s26, 1
        %s359 = smul.addr %s358, 32
        %s360 = smul.addr %s359, 8
        %s361 = scalar_lea.vmem %s8, %s360
        %p362 = scmp.lt.s32.totalorder %s26, 1
        %s363 = scalar_select %p362, %s26, 1
        %s364 = smul.addr %s363, 32
        %s365 = smul.addr %s364, 8
        %s366 = scalar_lea.vmem %s2, %s365
        %p367 = scmp.lt.s32.totalorder %s26, 1
        %s368 = scalar_select %p367, %s26, 1
        %s369 = smul.addr %s368, 32
        %s370 = smul.addr %s369, 8
        %s371 = scalar_lea.vmem %s3, %s370
        %p372 = scmp.lt.s32.totalorder %s26, 1
        %s373 = scalar_select %p372, %s26, 1
        %s374 = smul.addr %s373, 32
        %s375 = smul.addr %s374, 8
        %s376 = scalar_lea.vmem %s8, %s375
        %v378 = vld [vmem:[%s314] sm:$0xff]
        %v379 = vld [vmem:[%s314 + $0x8] sm:$0xff]
        %v380 = vld [vmem:[%s314 + $0x10] sm:$0xff]
        %v381 = vld [vmem:[%s314 + $0x18] sm:$0xff]
        %v382 = vld [vmem:[%s314 + $0x20] sm:$0xff]
        %v383 = vld [vmem:[%s314 + $0x28] sm:$0xff]
        %v384 = vld [vmem:[%s314 + $0x30] sm:$0xff]
        %v385 = vld [vmem:[%s314 + $0x38] sm:$0xff]
        %v386 = vld [vmem:[%s314 + $0x40] sm:$0xff]
        %v387 = vld [vmem:[%s314 + $0x48] sm:$0xff]
        %v388 = vld [vmem:[%s314 + $0x50] sm:$0xff]
        %v389 = vld [vmem:[%s314 + $0x58] sm:$0xff]
        %v390 = vld [vmem:[%s314 + $0x60] sm:$0xff]
        %v391 = vld [vmem:[%s314 + $0x68] sm:$0xff]
        %v392 = vld [vmem:[%s314 + $0x70] sm:$0xff]
        %v393 = vld [vmem:[%s314 + $0x78] sm:$0xff]
        %v394 = vld [vmem:[%s366] sm:$0xff]
        %v395 = vld [vmem:[%s366 + $0x8] sm:$0xff]
        %v396 = vld [vmem:[%s366 + $0x10] sm:$0xff]
        %v397 = vld [vmem:[%s366 + $0x18] sm:$0xff]
        %v398 = vld [vmem:[%s366 + $0x20] sm:$0xff]
        %v399 = vld [vmem:[%s366 + $0x28] sm:$0xff]
        %v400 = vld [vmem:[%s366 + $0x30] sm:$0xff]
        %v401 = vld [vmem:[%s366 + $0x38] sm:$0xff]
        %v402 = vld [vmem:[%s366 + $0x40] sm:$0xff]
        %v403 = vld [vmem:[%s366 + $0x48] sm:$0xff]
        %v404 = vld [vmem:[%s366 + $0x50] sm:$0xff]
        %v405 = vld [vmem:[%s366 + $0x58] sm:$0xff]
        %v406 = vld [vmem:[%s366 + $0x60] sm:$0xff]
        %v407 = vld [vmem:[%s366 + $0x68] sm:$0xff]
        %v408 = vld [vmem:[%s366 + $0x70] sm:$0xff]
        %v409 = vld [vmem:[%s366 + $0x78] sm:$0xff]
        %v410 = vld [vmem:[%s366 + $0x80] sm:$0xff]
        %v411 = vld [vmem:[%s366 + $0x88] sm:$0xff]
        %v412 = vld [vmem:[%s366 + $0x90] sm:$0xff]
        %v413 = vld [vmem:[%s366 + $0x98] sm:$0xff]
        %v414 = vld [vmem:[%s366 + $0xa0] sm:$0xff]
        %v415 = vld [vmem:[%s366 + $0xa8] sm:$0xff]
        %v416 = vld [vmem:[%s366 + $0xb0] sm:$0xff]
        %v417 = vld [vmem:[%s366 + $0xb8] sm:$0xff]
        %v418 = vld [vmem:[%s366 + $0xc0] sm:$0xff]
        %v419 = vld [vmem:[%s366 + $0xc8] sm:$0xff]
        %v420 = vld [vmem:[%s366 + $0xd0] sm:$0xff]
        %v421 = vld [vmem:[%s366 + $0xd8] sm:$0xff]
        %v422 = vld [vmem:[%s366 + $0xe0] sm:$0xff]
        %v423 = vld [vmem:[%s366 + $0xe8] sm:$0xff]
        %v424 = vld [vmem:[%s366 + $0xf0] sm:$0xff]
        %v425 = vld [vmem:[%s366 + $0xf8] sm:$0xff]
        %v426 = vpack.c.bf16 %v379, %v378
        %v427 = vpack.c.bf16 %v381, %v380
        %v428 = vpack.c.bf16 %v383, %v382
        %v429 = vpack.c.bf16 %v385, %v384
        %v430 = vpack.c.bf16 %v387, %v386
        %v431 = vpack.c.bf16 %v389, %v388
        %v432 = vpack.c.bf16 %v391, %v390
        %v433 = vpack.c.bf16 %v393, %v392
        %v434 = vld [vmem:[%s0] sm:$0x1]
        %v435 = vsub.f32 1.0, %v434
        %v436 = vmul.f32 %v435, -1e+09
        %v437 = vld [vmem:[%s371] sm:$0xff]
        %v438 = vld [vmem:[%s371 + $0x8] sm:$0xff]
        %v439 = vld [vmem:[%s371 + $0x10] sm:$0xff]
        %v440 = vld [vmem:[%s371 + $0x18] sm:$0xff]
        %v441 = vld [vmem:[%s371 + $0x20] sm:$0xff]
        %v442 = vld [vmem:[%s371 + $0x28] sm:$0xff]
        %v443 = vld [vmem:[%s371 + $0x30] sm:$0xff]
        %v444 = vld [vmem:[%s371 + $0x38] sm:$0xff]
        %v445 = vld [vmem:[%s371 + $0x40] sm:$0xff]
        %v446 = vld [vmem:[%s371 + $0x48] sm:$0xff]
        %v447 = vld [vmem:[%s371 + $0x50] sm:$0xff]
        %v448 = vld [vmem:[%s371 + $0x58] sm:$0xff]
        %v449 = vld [vmem:[%s371 + $0x60] sm:$0xff]
        %v450 = vld [vmem:[%s371 + $0x68] sm:$0xff]
        %v451 = vld [vmem:[%s371 + $0x70] sm:$0xff]
        %v452 = vld [vmem:[%s371 + $0x78] sm:$0xff]
        %v453 = vld [vmem:[%s371 + $0x80] sm:$0xff]
        %v454 = vld [vmem:[%s371 + $0x88] sm:$0xff]
        %v455 = vld [vmem:[%s371 + $0x90] sm:$0xff]
        %v456 = vld [vmem:[%s371 + $0x98] sm:$0xff]
        %v457 = vld [vmem:[%s371 + $0xa0] sm:$0xff]
        %v458 = vld [vmem:[%s371 + $0xa8] sm:$0xff]
        %v459 = vld [vmem:[%s371 + $0xb0] sm:$0xff]
        %v460 = vld [vmem:[%s371 + $0xb8] sm:$0xff]
        %v461 = vld [vmem:[%s371 + $0xc0] sm:$0xff]
        %v462 = vld [vmem:[%s371 + $0xc8] sm:$0xff]
        %v463 = vld [vmem:[%s371 + $0xd0] sm:$0xff]
        %v464 = vld [vmem:[%s371 + $0xd8] sm:$0xff]
        %v465 = vld [vmem:[%s371 + $0xe0] sm:$0xff]
        %v466 = vld [vmem:[%s371 + $0xe8] sm:$0xff]
        %v467 = vld [vmem:[%s371 + $0xf0] sm:$0xff]
        %v468 = vld [vmem:[%s371 + $0xf8] sm:$0xff]
        %v469 = vsub.f32 1.0, %v437
        %v470 = vsub.f32 1.0, %v438
        %v471 = vsub.f32 1.0, %v439
        %v472 = vsub.f32 1.0, %v440
        %v473 = vsub.f32 1.0, %v441
        %v474 = vsub.f32 1.0, %v442
        %v475 = vsub.f32 1.0, %v443
        %v476 = vsub.f32 1.0, %v444
        %v477 = vsub.f32 1.0, %v445
        %v478 = vsub.f32 1.0, %v446
        %v479 = vsub.f32 1.0, %v447
        %v480 = vsub.f32 1.0, %v448
        %v481 = vsub.f32 1.0, %v449
        %v482 = vsub.f32 1.0, %v450
        %v483 = vsub.f32 1.0, %v451
        %v484 = vsub.f32 1.0, %v452
        %v485 = vsub.f32 1.0, %v453
        %v486 = vsub.f32 1.0, %v454
        %v487 = vsub.f32 1.0, %v455
        %v488 = vsub.f32 1.0, %v456
        %v489 = vsub.f32 1.0, %v457
        %v490 = vsub.f32 1.0, %v458
        %v491 = vsub.f32 1.0, %v459
        %v492 = vsub.f32 1.0, %v460
        %v493 = vsub.f32 1.0, %v461
        %v494 = vsub.f32 1.0, %v462
        %v495 = vsub.f32 1.0, %v463
        %v496 = vsub.f32 1.0, %v464
        %v497 = vsub.f32 1.0, %v465
        %v498 = vsub.f32 1.0, %v466
        %v499 = vsub.f32 1.0, %v467
        %v500 = vsub.f32 1.0, %v468
        %v501 = vmul.f32 %v469, -1e+09
        %v502 = vmul.f32 %v470, -1e+09
        %v503 = vmul.f32 %v471, -1e+09
        %v504 = vmul.f32 %v472, -1e+09
        %v505 = vmul.f32 %v473, -1e+09
        %v506 = vmul.f32 %v474, -1e+09
        %v507 = vmul.f32 %v475, -1e+09
        %v508 = vmul.f32 %v476, -1e+09
        %v509 = vmul.f32 %v477, -1e+09
        %v510 = vmul.f32 %v478, -1e+09
        %v511 = vmul.f32 %v479, -1e+09
        %v512 = vmul.f32 %v480, -1e+09
        %v513 = vmul.f32 %v481, -1e+09
        %v514 = vmul.f32 %v482, -1e+09
        %v515 = vmul.f32 %v483, -1e+09
        %v516 = vmul.f32 %v484, -1e+09
        %v517 = vmul.f32 %v485, -1e+09
        %v518 = vmul.f32 %v486, -1e+09
        %v519 = vmul.f32 %v487, -1e+09
        %v520 = vmul.f32 %v488, -1e+09
        %v521 = vmul.f32 %v489, -1e+09
        %v522 = vmul.f32 %v490, -1e+09
        %v523 = vmul.f32 %v491, -1e+09
        %v524 = vmul.f32 %v492, -1e+09
        %v525 = vmul.f32 %v493, -1e+09
        %v526 = vmul.f32 %v494, -1e+09
        %v527 = vmul.f32 %v495, -1e+09
        %v528 = vmul.f32 %v496, -1e+09
        %v529 = vmul.f32 %v497, -1e+09
        %v530 = vmul.f32 %v498, -1e+09
        %v531 = vmul.f32 %v499, -1e+09
        %v532 = vmul.f32 %v500, -1e+09
        %v533 = vpack.c.bf16 %v395, %v394
        %v534 = vpack.c.bf16 %v397, %v396
        %v535 = vpack.c.bf16 %v399, %v398
        %v536 = vpack.c.bf16 %v401, %v400
        %v537 = vpack.c.bf16 %v403, %v402
        %v538 = vpack.c.bf16 %v405, %v404
        %v539 = vpack.c.bf16 %v407, %v406
        %v540 = vpack.c.bf16 %v409, %v408
        %v541 = vpack.c.bf16 %v411, %v410
        %v542 = vpack.c.bf16 %v413, %v412
        %v543 = vpack.c.bf16 %v415, %v414
        %v544 = vpack.c.bf16 %v417, %v416
        %v545 = vpack.c.bf16 %v419, %v418
        %v546 = vpack.c.bf16 %v421, %v420
        %v547 = vpack.c.bf16 %v423, %v422
        %v548 = vpack.c.bf16 %v425, %v424
        %549 = vmatprep.subr.bf16.mxu0 0
        %550 = vmatpush1.bf16.xpose.msra.mxu0 %v426
        %551 = vmatprep.subr.bf16.mxu0 0
        %552 = vmatpush1.bf16.xpose.msra.mxu0 %v427
        %553 = vmatprep.subr.bf16.mxu0 0
        %554 = vmatpush1.bf16.xpose.msra.mxu0 %v428
        %555 = vmatprep.subr.bf16.mxu0 0
        %556 = vmatpush1.bf16.xpose.msra.mxu0 %v429
        %557 = vmatprep.subr.bf16.mxu0 0
        %558 = vmatpush1.bf16.xpose.msra.mxu0 %v430
        %559 = vmatprep.subr.bf16.mxu0 0
        %560 = vmatpush1.bf16.xpose.msra.mxu0 %v431
        %561 = vmatprep.subr.bf16.mxu0 0
        %562 = vmatpush1.bf16.xpose.msra.mxu0 %v432
        %563 = vmatprep.subr.bf16.mxu0 0
        %564 = vmatpush1.bf16.xpose.msra.mxu0 %v433
        %565 = vmatprep.subr.bf16.mxu0 0
        %566 = vmatpush1.bf16.xpose.msra.mxu0 0
        %567 = vmatprep.subr.bf16.mxu0 0
        %568 = vmatpush1.bf16.xpose.msra.mxu0 0
        %569 = vmatprep.subr.bf16.mxu0 0
        %570 = vmatpush1.bf16.xpose.msra.mxu0 0
        %571 = vmatprep.subr.bf16.mxu0 0
        %572 = vmatpush1.bf16.xpose.msra.mxu0 0
        %573 = vmatprep.subr.bf16.mxu0 0
        %574 = vmatpush1.bf16.xpose.msra.mxu0 0
        %575 = vmatprep.subr.bf16.mxu0 0
        %576 = vmatpush1.bf16.xpose.msra.mxu0 0
        %577 = vmatprep.subr.bf16.mxu0 0
        %578 = vmatpush1.bf16.xpose.msra.mxu0 0
        %579 = vmatprep.subr.bf16.mxu0 0
        %580 = vmatpush1.bf16.xpose.msra.mxu0 0
        %581 = vmatprep.mubr.bf16.mxu0 0
        %582 = vmatmul.mubr.bf16.gmra.mrb[0].mxu0 %v533
        %v583 = vpop.f32.mrb[0].mxu0
        %v584 = vadd.f32 0.0, %v583
        %v585 = vpop.f32.mrb[0].mxu0
        %v586 = vpop.f32.mrb[0].mxu0
        %v587 = vadd.f32 0.0, %v586
        %v588 = vpop.f32.mrb[0].mxu0
        %589 = vmatprep.mubr.bf16.mxu0 0
        %590 = vmatmul.mubr.bf16.gmra.mrb[0].mxu0 %v534
        %v591 = vpop.f32.mrb[0].mxu0
        %v592 = vadd.f32 0.0, %v591
        %v593 = vpop.f32.mrb[0].mxu0
        %v594 = vpop.f32.mrb[0].mxu0
        %v595 = vadd.f32 0.0, %v594
        %v596 = vpop.f32.mrb[0].mxu0
        %597 = vmatprep.mubr.bf16.mxu0 0
        %598 = vmatmul.mubr.bf16.gmra.mrb[0].mxu0 %v535
        %v599 = vpop.f32.mrb[0].mxu0
        %v600 = vadd.f32 0.0, %v599
        %v601 = vpop.f32.mrb[0].mxu0
        %v602 = vpop.f32.mrb[0].mxu0
        %v603 = vadd.f32 0.0, %v602
        %v604 = vpop.f32.mrb[0].mxu0
        %605 = vmatprep.mubr.bf16.mxu0 0
        %606 = vmatmul.mubr.bf16.gmra.mrb[0].mxu0 %v536
        %v607 = vpop.f32.mrb[0].mxu0
        %v608 = vadd.f32 0.0, %v607
        %v609 = vpop.f32.mrb[0].mxu0
        %v610 = vpop.f32.mrb[0].mxu0
        %v611 = vadd.f32 0.0, %v610
        %v612 = vpop.f32.mrb[0].mxu0
        %613 = vmatprep.mubr.bf16.mxu0 0
        %614 = vmatmul.mubr.bf16.gmra.mrb[0].mxu0 %v537
        %v615 = vpop.f32.mrb[0].mxu0
        %v616 = vadd.f32 0.0, %v615
        %v617 = vpop.f32.mrb[0].mxu0
        %v618 = vpop.f32.mrb[0].mxu0
        %v619 = vadd.f32 0.0, %v618
        %v620 = vpop.f32.mrb[0].mxu0
        %621 = vmatprep.mubr.bf16.mxu0 0
        %622 = vmatmul.mubr.bf16.gmra.mrb[0].mxu0 %v538
        %v623 = vpop.f32.mrb[0].mxu0
        %v624 = vadd.f32 0.0, %v623
        %v625 = vpop.f32.mrb[0].mxu0
        %v626 = vpop.f32.mrb[0].mxu0
        %v627 = vadd.f32 0.0, %v626
        %v628 = vpop.f32.mrb[0].mxu0
        %629 = vmatprep.mubr.bf16.mxu0 0
        %630 = vmatmul.mubr.bf16.gmra.mrb[0].mxu0 %v539
        %v631 = vpop.f32.mrb[0].mxu0
        %v632 = vadd.f32 0.0, %v631
        %v633 = vpop.f32.mrb[0].mxu0
        %v634 = vpop.f32.mrb[0].mxu0
        %v635 = vadd.f32 0.0, %v634
        %v636 = vpop.f32.mrb[0].mxu0
        %637 = vmatprep.mubr.bf16.mxu0 0
        %638 = vmatmul.mubr.bf16.gmra.mrb[0].mxu0 %v540
        %v639 = vpop.f32.mrb[0].mxu0
        %v640 = vadd.f32 0.0, %v639
        %v641 = vpop.f32.mrb[0].mxu0
        %v642 = vpop.f32.mrb[0].mxu0
        %v643 = vadd.f32 0.0, %v642
        %v644 = vpop.f32.mrb[0].mxu0
        %645 = vmatprep.mubr.bf16.mxu0 0
        %646 = vmatmul.mubr.bf16.gmra.mrb[0].mxu0 %v541
        %v647 = vpop.f32.mrb[0].mxu0
        %v648 = vadd.f32 0.0, %v647
        %v649 = vpop.f32.mrb[0].mxu0
        %v650 = vpop.f32.mrb[0].mxu0
        %v651 = vadd.f32 0.0, %v650
        %v652 = vpop.f32.mrb[0].mxu0
        %653 = vmatprep.mubr.bf16.mxu0 0
        %654 = vmatmul.mubr.bf16.gmra.mrb[0].mxu0 %v542
        %v655 = vpop.f32.mrb[0].mxu0
        %v656 = vadd.f32 0.0, %v655
        %v657 = vpop.f32.mrb[0].mxu0
        %v658 = vpop.f32.mrb[0].mxu0
        %v659 = vadd.f32 0.0, %v658
        %v660 = vpop.f32.mrb[0].mxu0
        %661 = vmatprep.mubr.bf16.mxu0 0
        %662 = vmatmul.mubr.bf16.gmra.mrb[0].mxu0 %v543
        %v663 = vpop.f32.mrb[0].mxu0
        %v664 = vadd.f32 0.0, %v663
        %v665 = vpop.f32.mrb[0].mxu0
        %v666 = vpop.f32.mrb[0].mxu0
        %v667 = vadd.f32 0.0, %v666
        %v668 = vpop.f32.mrb[0].mxu0
        %669 = vmatprep.mubr.bf16.mxu0 0
        %670 = vmatmul.mubr.bf16.gmra.mrb[0].mxu0 %v544
        %v671 = vpop.f32.mrb[0].mxu0
        %v672 = vadd.f32 0.0, %v671
        %v673 = vpop.f32.mrb[0].mxu0
        %v674 = vpop.f32.mrb[0].mxu0
        %v675 = vadd.f32 0.0, %v674
        %v676 = vpop.f32.mrb[0].mxu0
        %677 = vmatprep.mubr.bf16.mxu0 0
        %678 = vmatmul.mubr.bf16.gmra.mrb[0].mxu0 %v545
        %v679 = vpop.f32.mrb[0].mxu0
        %v680 = vadd.f32 0.0, %v679
        %v681 = vpop.f32.mrb[0].mxu0
        %v682 = vpop.f32.mrb[0].mxu0
        %v683 = vadd.f32 0.0, %v682
        %v684 = vpop.f32.mrb[0].mxu0
        %685 = vmatprep.mubr.bf16.mxu0 0
        %686 = vmatmul.mubr.bf16.gmra.mrb[0].mxu0 %v546
        %v687 = vpop.f32.mrb[0].mxu0
        %v688 = vadd.f32 0.0, %v687
        %v689 = vpop.f32.mrb[0].mxu0
        %v690 = vpop.f32.mrb[0].mxu0
        %v691 = vadd.f32 0.0, %v690
        %v692 = vpop.f32.mrb[0].mxu0
        %693 = vmatprep.mubr.bf16.mxu0 0
        %694 = vmatmul.mubr.bf16.gmra.mrb[0].mxu0 %v547
        %v695 = vpop.f32.mrb[0].mxu0
        %v696 = vadd.f32 0.0, %v695
        %v697 = vpop.f32.mrb[0].mxu0
        %v698 = vpop.f32.mrb[0].mxu0
        %v699 = vadd.f32 0.0, %v698
        %v700 = vpop.f32.mrb[0].mxu0
        %701 = vmatprep.mubr.bf16.mxu0 0
        %702 = vmatmul.mubr.bf16.gmra.mrb[0].mxu0 %v548
        %v703 = vpop.f32.mrb[0].mxu0
        %v704 = vadd.f32 0.0, %v703
        %v705 = vpop.f32.mrb[0].mxu0
        %v706 = vpop.f32.mrb[0].mxu0
        %v707 = vadd.f32 0.0, %v706
        %v708 = vpop.f32.mrb[0].mxu0
        %709 = vdwg.mxu0
        %v710 = vmul.f32 %v584, 0.088388346
        %v711 = vmul.f32 %v587, 0.088388346
        %v712 = vmul.f32 %v592, 0.088388346
        %v713 = vmul.f32 %v595, 0.088388346
        %v714 = vmul.f32 %v600, 0.088388346
        %v715 = vmul.f32 %v603, 0.088388346
        %v716 = vmul.f32 %v608, 0.088388346
        %v717 = vmul.f32 %v611, 0.088388346
        %v718 = vmul.f32 %v616, 0.088388346
        %v719 = vmul.f32 %v619, 0.088388346
        %v720 = vmul.f32 %v624, 0.088388346
        %v721 = vmul.f32 %v627, 0.088388346
        %v722 = vmul.f32 %v632, 0.088388346
        %v723 = vmul.f32 %v635, 0.088388346
        %v724 = vmul.f32 %v640, 0.088388346
        %v725 = vmul.f32 %v643, 0.088388346
        %v726 = vmul.f32 %v648, 0.088388346
        %v727 = vmul.f32 %v651, 0.088388346
        %v728 = vmul.f32 %v656, 0.088388346
        %v729 = vmul.f32 %v659, 0.088388346
        %v730 = vmul.f32 %v664, 0.088388346
        %v731 = vmul.f32 %v667, 0.088388346
        %v732 = vmul.f32 %v672, 0.088388346
        %v733 = vmul.f32 %v675, 0.088388346
        %v734 = vmul.f32 %v680, 0.088388346
        %v735 = vmul.f32 %v683, 0.088388346
        %v736 = vmul.f32 %v688, 0.088388346
        %v737 = vmul.f32 %v691, 0.088388346
        %v738 = vmul.f32 %v696, 0.088388346
        %v739 = vmul.f32 %v699, 0.088388346
        %v740 = vmul.f32 %v704, 0.088388346
        %v741 = vmul.f32 %v707, 0.088388346
        %v743 = vlaneseq
        %v744 = vshrl.u32 %v743, 7
        %v745 = vsub.s32 0, %v744
        %v746 = vrot.slane %v436, %v745
        %v748 = vadd.f32 %v710, %v746
        %v749 = vadd.f32 %v711, %v746
        %v750 = vadd.f32 %v712, %v746
        %v751 = vadd.f32 %v713, %v746
        %v752 = vadd.f32 %v714, %v746
        %v753 = vadd.f32 %v715, %v746
        %v754 = vadd.f32 %v716, %v746
        %v755 = vadd.f32 %v717, %v746
        %v756 = vadd.f32 %v718, %v746
        %v757 = vadd.f32 %v719, %v746
        %v758 = vadd.f32 %v720, %v746
        %v759 = vadd.f32 %v721, %v746
        %v760 = vadd.f32 %v722, %v746
        %v761 = vadd.f32 %v723, %v746
        %v762 = vadd.f32 %v724, %v746
        %v763 = vadd.f32 %v725, %v746
        %v764 = vadd.f32 %v726, %v746
        %v765 = vadd.f32 %v727, %v746
        %v766 = vadd.f32 %v728, %v746
        %v767 = vadd.f32 %v729, %v746
        %v768 = vadd.f32 %v730, %v746
        %v769 = vadd.f32 %v731, %v746
        %v770 = vadd.f32 %v732, %v746
        %v771 = vadd.f32 %v733, %v746
        %v772 = vadd.f32 %v734, %v746
        %v773 = vadd.f32 %v735, %v746
        %v774 = vadd.f32 %v736, %v746
        %v775 = vadd.f32 %v737, %v746
        %v776 = vadd.f32 %v738, %v746
        %v777 = vadd.f32 %v739, %v746
        %v778 = vadd.f32 %v740, %v746
        %v779 = vadd.f32 %v741, %v746
        %780 = vmax.xlane.f32.xlu0 %v748
        %v781 = vpop.xlane.xlu0 %780
        %782 = vmax.xlane.f32.xlu0 %v749
        %v783 = vpop.xlane.xlu0 %782
        %784 = vmax.xlane.f32.xlu0 %v750
        %v785 = vpop.xlane.xlu0 %784
        %786 = vmax.xlane.f32.xlu0 %v751
        %v787 = vpop.xlane.xlu0 %786
        %788 = vmax.xlane.f32.xlu0 %v752
        %v789 = vpop.xlane.xlu0 %788
        %790 = vmax.xlane.f32.xlu0 %v753
        %v791 = vpop.xlane.xlu0 %790
        %792 = vmax.xlane.f32.xlu0 %v754
        %v793 = vpop.xlane.xlu0 %792
        %794 = vmax.xlane.f32.xlu0 %v755
        %v795 = vpop.xlane.xlu0 %794
        %796 = vmax.xlane.f32.xlu0 %v756
        %v797 = vpop.xlane.xlu0 %796
        %798 = vmax.xlane.f32.xlu0 %v757
        %v799 = vpop.xlane.xlu0 %798
        %800 = vmax.xlane.f32.xlu0 %v758
        %v801 = vpop.xlane.xlu0 %800
        %802 = vmax.xlane.f32.xlu0 %v759
        %v803 = vpop.xlane.xlu0 %802
        %804 = vmax.xlane.f32.xlu0 %v760
        %v805 = vpop.xlane.xlu0 %804
        %806 = vmax.xlane.f32.xlu0 %v761
        %v807 = vpop.xlane.xlu0 %806
        %808 = vmax.xlane.f32.xlu0 %v762
        %v809 = vpop.xlane.xlu0 %808
        %810 = vmax.xlane.f32.xlu0 %v763
        %v811 = vpop.xlane.xlu0 %810
        %812 = vmax.xlane.f32.xlu0 %v764
        %v813 = vpop.xlane.xlu0 %812
        %814 = vmax.xlane.f32.xlu0 %v765
        %v815 = vpop.xlane.xlu0 %814
        %816 = vmax.xlane.f32.xlu0 %v766
        %v817 = vpop.xlane.xlu0 %816
        %818 = vmax.xlane.f32.xlu0 %v767
        %v819 = vpop.xlane.xlu0 %818
        %820 = vmax.xlane.f32.xlu0 %v768
        %v821 = vpop.xlane.xlu0 %820
        %822 = vmax.xlane.f32.xlu0 %v769
        %v823 = vpop.xlane.xlu0 %822
        %824 = vmax.xlane.f32.xlu0 %v770
        %v825 = vpop.xlane.xlu0 %824
        %826 = vmax.xlane.f32.xlu0 %v771
        %v827 = vpop.xlane.xlu0 %826
        %828 = vmax.xlane.f32.xlu0 %v772
        %v829 = vpop.xlane.xlu0 %828
        %830 = vmax.xlane.f32.xlu0 %v773
        %v831 = vpop.xlane.xlu0 %830
        %832 = vmax.xlane.f32.xlu0 %v774
        %v833 = vpop.xlane.xlu0 %832
        %834 = vmax.xlane.f32.xlu0 %v775
        %v835 = vpop.xlane.xlu0 %834
        %836 = vmax.xlane.f32.xlu0 %v776
        %v837 = vpop.xlane.xlu0 %836
        %838 = vmax.xlane.f32.xlu0 %v777
        %v839 = vpop.xlane.xlu0 %838
        %840 = vmax.xlane.f32.xlu0 %v778
        %v841 = vpop.xlane.xlu0 %840
        %842 = vmax.xlane.f32.xlu0 %v779
        %v843 = vpop.xlane.xlu0 %842
        %v844 = vsub.f32 %v748, %v781
        %v845 = vsub.f32 %v749, %v783
        %v846 = vsub.f32 %v750, %v785
        %v847 = vsub.f32 %v751, %v787
        %v848 = vsub.f32 %v752, %v789
        %v849 = vsub.f32 %v753, %v791
        %v850 = vsub.f32 %v754, %v793
        %v851 = vsub.f32 %v755, %v795
        %v852 = vsub.f32 %v756, %v797
        %v853 = vsub.f32 %v757, %v799
        %v854 = vsub.f32 %v758, %v801
        %v855 = vsub.f32 %v759, %v803
        %v856 = vsub.f32 %v760, %v805
        %v857 = vsub.f32 %v761, %v807
        %v858 = vsub.f32 %v762, %v809
        %v859 = vsub.f32 %v763, %v811
        %v860 = vsub.f32 %v764, %v813
        %v861 = vsub.f32 %v765, %v815
        %v862 = vsub.f32 %v766, %v817
        %v863 = vsub.f32 %v767, %v819
        %v864 = vsub.f32 %v768, %v821
        %v865 = vsub.f32 %v769, %v823
        %v866 = vsub.f32 %v770, %v825
        %v867 = vsub.f32 %v771, %v827
        %v868 = vsub.f32 %v772, %v829
        %v869 = vsub.f32 %v773, %v831
        %v870 = vsub.f32 %v774, %v833
        %v871 = vsub.f32 %v775, %v835
        %v872 = vsub.f32 %v776, %v837
        %v873 = vsub.f32 %v777, %v839
        %v874 = vsub.f32 %v778, %v841
        %v875 = vsub.f32 %v779, %v843
        %v876 = vmul.f32 %v844, 1.442695
        %v877 = vpow.pop %v876
        %v878 = vmul.f32 %v845, 1.442695
        %v879 = vpow.pop %v878
        %v880 = vmul.f32 %v846, 1.442695
        %v881 = vpow.pop %v880
        %v882 = vmul.f32 %v847, 1.442695
        %v883 = vpow.pop %v882
        %v884 = vmul.f32 %v848, 1.442695
        %v885 = vpow.pop %v884
        %v886 = vmul.f32 %v849, 1.442695
        %v887 = vpow.pop %v886
        %v888 = vmul.f32 %v850, 1.442695
        %v889 = vpow.pop %v888
        %v890 = vmul.f32 %v851, 1.442695
        %v891 = vpow.pop %v890
        %v892 = vmul.f32 %v852, 1.442695
        %v893 = vpow.pop %v892
        %v894 = vmul.f32 %v853, 1.442695
        %v895 = vpow.pop %v894
        %v896 = vmul.f32 %v854, 1.442695
        %v897 = vpow.pop %v896
        %v898 = vmul.f32 %v855, 1.442695
        %v899 = vpow.pop %v898
        %v900 = vmul.f32 %v856, 1.442695
        %v901 = vpow.pop %v900
        %v902 = vmul.f32 %v857, 1.442695
        %v903 = vpow.pop %v902
        %v904 = vmul.f32 %v858, 1.442695
        %v905 = vpow.pop %v904
        %v906 = vmul.f32 %v859, 1.442695
        %v907 = vpow.pop %v906
        %v908 = vmul.f32 %v860, 1.442695
        %v909 = vpow.pop %v908
        %v910 = vmul.f32 %v861, 1.442695
        %v911 = vpow.pop %v910
        %v912 = vmul.f32 %v862, 1.442695
        %v913 = vpow.pop %v912
        %v914 = vmul.f32 %v863, 1.442695
        %v915 = vpow.pop %v914
        %v916 = vmul.f32 %v864, 1.442695
        %v917 = vpow.pop %v916
        %v918 = vmul.f32 %v865, 1.442695
        %v919 = vpow.pop %v918
        %v920 = vmul.f32 %v866, 1.442695
        %v921 = vpow.pop %v920
        %v922 = vmul.f32 %v867, 1.442695
        %v923 = vpow.pop %v922
        %v924 = vmul.f32 %v868, 1.442695
        %v925 = vpow.pop %v924
        %v926 = vmul.f32 %v869, 1.442695
        %v927 = vpow.pop %v926
        %v928 = vmul.f32 %v870, 1.442695
        %v929 = vpow.pop %v928
        %v930 = vmul.f32 %v871, 1.442695
        %v931 = vpow.pop %v930
        %v932 = vmul.f32 %v872, 1.442695
        %v933 = vpow.pop %v932
        %v934 = vmul.f32 %v873, 1.442695
        %v935 = vpow.pop %v934
        %v936 = vmul.f32 %v874, 1.442695
        %v937 = vpow.pop %v936
        %v938 = vmul.f32 %v875, 1.442695
        %v939 = vpow.pop %v938
        %940 = vadd.xlane.f32.xlu0 %v877
        %v941 = vpop.xlane.xlu0 %940
        %942 = vadd.xlane.f32.xlu0 %v879
        %v943 = vpop.xlane.xlu0 %942
        %944 = vadd.xlane.f32.xlu0 %v881
        %v945 = vpop.xlane.xlu0 %944
        %946 = vadd.xlane.f32.xlu0 %v883
        %v947 = vpop.xlane.xlu0 %946
        %948 = vadd.xlane.f32.xlu0 %v885
        %v949 = vpop.xlane.xlu0 %948
        %950 = vadd.xlane.f32.xlu0 %v887
        %v951 = vpop.xlane.xlu0 %950
        %952 = vadd.xlane.f32.xlu0 %v889
        %v953 = vpop.xlane.xlu0 %952
        %954 = vadd.xlane.f32.xlu0 %v891
        %v955 = vpop.xlane.xlu0 %954
        %956 = vadd.xlane.f32.xlu0 %v893
        %v957 = vpop.xlane.xlu0 %956
        %958 = vadd.xlane.f32.xlu0 %v895
        %v959 = vpop.xlane.xlu0 %958
        %960 = vadd.xlane.f32.xlu0 %v897
        %v961 = vpop.xlane.xlu0 %960
        %962 = vadd.xlane.f32.xlu0 %v899
        %v963 = vpop.xlane.xlu0 %962
        %964 = vadd.xlane.f32.xlu0 %v901
        %v965 = vpop.xlane.xlu0 %964
        %966 = vadd.xlane.f32.xlu0 %v903
        %v967 = vpop.xlane.xlu0 %966
        %968 = vadd.xlane.f32.xlu0 %v905
        %v969 = vpop.xlane.xlu0 %968
        %970 = vadd.xlane.f32.xlu0 %v907
        %v971 = vpop.xlane.xlu0 %970
        %972 = vadd.xlane.f32.xlu0 %v909
        %v973 = vpop.xlane.xlu0 %972
        %974 = vadd.xlane.f32.xlu0 %v911
        %v975 = vpop.xlane.xlu0 %974
        %976 = vadd.xlane.f32.xlu0 %v913
        %v977 = vpop.xlane.xlu0 %976
        %978 = vadd.xlane.f32.xlu0 %v915
        %v979 = vpop.xlane.xlu0 %978
        %980 = vadd.xlane.f32.xlu0 %v917
        %v981 = vpop.xlane.xlu0 %980
        %982 = vadd.xlane.f32.xlu0 %v919
        %v983 = vpop.xlane.xlu0 %982
        %984 = vadd.xlane.f32.xlu0 %v921
        %v985 = vpop.xlane.xlu0 %984
        %986 = vadd.xlane.f32.xlu0 %v923
        %v987 = vpop.xlane.xlu0 %986
        %988 = vadd.xlane.f32.xlu0 %v925
        %v989 = vpop.xlane.xlu0 %988
        %990 = vadd.xlane.f32.xlu0 %v927
        %v991 = vpop.xlane.xlu0 %990
        %992 = vadd.xlane.f32.xlu0 %v929
        %v993 = vpop.xlane.xlu0 %992
        %994 = vadd.xlane.f32.xlu0 %v931
        %v995 = vpop.xlane.xlu0 %994
        %996 = vadd.xlane.f32.xlu0 %v933
        %v997 = vpop.xlane.xlu0 %996
        %998 = vadd.xlane.f32.xlu0 %v935
        %v999 = vpop.xlane.xlu0 %998
        %1000 = vadd.xlane.f32.xlu0 %v937
        %v1001 = vpop.xlane.xlu0 %1000
        %1002 = vadd.xlane.f32.xlu0 %v939
        %v1003 = vpop.xlane.xlu0 %1002
        %v1004 = vrcp.pop %v941
        %v1005 = vrcp.pop %v943
        %v1006 = vrcp.pop %v945
        %v1007 = vrcp.pop %v947
        %v1008 = vrcp.pop %v949
        %v1009 = vrcp.pop %v951
        %v1010 = vrcp.pop %v953
        %v1011 = vrcp.pop %v955
        %v1012 = vrcp.pop %v957
        %v1013 = vrcp.pop %v959
        %v1014 = vrcp.pop %v961
        %v1015 = vrcp.pop %v963
        %v1016 = vrcp.pop %v965
        %v1017 = vrcp.pop %v967
        %v1018 = vrcp.pop %v969
        %v1019 = vrcp.pop %v971
        %v1020 = vrcp.pop %v973
        %v1021 = vrcp.pop %v975
        %v1022 = vrcp.pop %v977
        %v1023 = vrcp.pop %v979
        %v1024 = vrcp.pop %v981
        %v1025 = vrcp.pop %v983
        %v1026 = vrcp.pop %v985
        %v1027 = vrcp.pop %v987
        %v1028 = vrcp.pop %v989
        %v1029 = vrcp.pop %v991
        %v1030 = vrcp.pop %v993
        %v1031 = vrcp.pop %v995
        %v1032 = vrcp.pop %v997
        %v1033 = vrcp.pop %v999
        %v1034 = vrcp.pop %v1001
        %v1035 = vrcp.pop %v1003
        %v1036 = vmul.f32 %v877, %v1004
        %v1037 = vmul.f32 %v879, %v1005
        %v1038 = vmul.f32 %v881, %v1006
        %v1039 = vmul.f32 %v883, %v1007
        %v1040 = vmul.f32 %v885, %v1008
        %v1041 = vmul.f32 %v887, %v1009
        %v1042 = vmul.f32 %v889, %v1010
        %v1043 = vmul.f32 %v891, %v1011
        %v1044 = vmul.f32 %v893, %v1012
        %v1045 = vmul.f32 %v895, %v1013
        %v1046 = vmul.f32 %v897, %v1014
        %v1047 = vmul.f32 %v899, %v1015
        %v1048 = vmul.f32 %v901, %v1016
        %v1049 = vmul.f32 %v903, %v1017
        %v1050 = vmul.f32 %v905, %v1018
        %v1051 = vmul.f32 %v907, %v1019
        %v1052 = vmul.f32 %v909, %v1020
        %v1053 = vmul.f32 %v911, %v1021
        %v1054 = vmul.f32 %v913, %v1022
        %v1055 = vmul.f32 %v915, %v1023
        %v1056 = vmul.f32 %v917, %v1024
        %v1057 = vmul.f32 %v919, %v1025
        %v1058 = vmul.f32 %v921, %v1026
        %v1059 = vmul.f32 %v923, %v1027
        %v1060 = vmul.f32 %v925, %v1028
        %v1061 = vmul.f32 %v927, %v1029
        %v1062 = vmul.f32 %v929, %v1030
        %v1063 = vmul.f32 %v931, %v1031
        %v1064 = vmul.f32 %v933, %v1032
        %v1065 = vmul.f32 %v935, %v1033
        %v1066 = vmul.f32 %v937, %v1034
        %v1067 = vmul.f32 %v939, %v1035
        %v1068 = vpack.c.bf16 %v1037, %v1036
        %v1069 = vpack.c.bf16 %v1039, %v1038
        %v1070 = vpack.c.bf16 %v1041, %v1040
        %v1071 = vpack.c.bf16 %v1043, %v1042
        %v1072 = vpack.c.bf16 %v1045, %v1044
        %v1073 = vpack.c.bf16 %v1047, %v1046
        %v1074 = vpack.c.bf16 %v1049, %v1048
        %v1075 = vpack.c.bf16 %v1051, %v1050
        %v1076 = vpack.c.bf16 %v1053, %v1052
        %v1077 = vpack.c.bf16 %v1055, %v1054
        %v1078 = vpack.c.bf16 %v1057, %v1056
        %v1079 = vpack.c.bf16 %v1059, %v1058
        %v1080 = vpack.c.bf16 %v1061, %v1060
        %v1081 = vpack.c.bf16 %v1063, %v1062
        %v1082 = vpack.c.bf16 %v1065, %v1064
        %v1083 = vpack.c.bf16 %v1067, %v1066
        %1084 = vmatprep.subr.bf16.mxu0 0
        %1085 = vmatpush1.bf16.msra.mxu0 %v426
        %1086 = vmatprep.subr.bf16.mxu0 0
        %1087 = vmatpush1.bf16.msra.mxu0 %v427
        %1088 = vmatprep.subr.bf16.mxu0 0
        %1089 = vmatpush1.bf16.msra.mxu0 %v428
        %1090 = vmatprep.subr.bf16.mxu0 0
        %1091 = vmatpush1.bf16.msra.mxu0 %v429
        %1092 = vmatprep.subr.bf16.mxu0 0
        %1093 = vmatpush1.bf16.msra.mxu0 %v430
        %1094 = vmatprep.subr.bf16.mxu0 0
        %1095 = vmatpush1.bf16.msra.mxu0 %v431
        %1096 = vmatprep.subr.bf16.mxu0 0
        %1097 = vmatpush1.bf16.msra.mxu0 %v432
        %1098 = vmatprep.subr.bf16.mxu0 0
        %1099 = vmatpush1.bf16.msra.mxu0 %v433
        %1100 = vmatprep.subr.bf16.mxu0 0
        %1101 = vmatpush1.bf16.msra.mxu0 0
        %1102 = vmatprep.subr.bf16.mxu0 0
        %1103 = vmatpush1.bf16.msra.mxu0 0
        %1104 = vmatprep.subr.bf16.mxu0 0
        %1105 = vmatpush1.bf16.msra.mxu0 0
        %1106 = vmatprep.subr.bf16.mxu0 0
        %1107 = vmatpush1.bf16.msra.mxu0 0
        %1108 = vmatprep.subr.bf16.mxu0 0
        %1109 = vmatpush1.bf16.msra.mxu0 0
        %1110 = vmatprep.subr.bf16.mxu0 0
        %1111 = vmatpush1.bf16.msra.mxu0 0
        %1112 = vmatprep.subr.bf16.mxu0 0
        %1113 = vmatpush1.bf16.msra.mxu0 0
        %1114 = vmatprep.subr.bf16.mxu0 0
        %1115 = vmatpush1.bf16.msra.mxu0 0
        %1116 = vmatprep.mubr.bf16.mxu0 0
        %1117 = vmatmul.mubr.bf16.gmra.mrb[0].mxu0 %v1068
        %v1118 = vpop.f32.mrb[0].mxu0
        %v1119 = vadd.f32 0.0, %v1118
        %v1120 = vpop.f32.mrb[0].mxu0
        %v1121 = vpop.f32.mrb[0].mxu0
        %v1122 = vadd.f32 0.0, %v1121
        %v1123 = vpop.f32.mrb[0].mxu0
        %1124 = vmatprep.mubr.bf16.mxu0 0
        %1125 = vmatmul.mubr.bf16.gmra.mrb[0].mxu0 %v1069
        %v1126 = vpop.f32.mrb[0].mxu0
        %v1127 = vadd.f32 0.0, %v1126
        %v1128 = vpop.f32.mrb[0].mxu0
        %v1129 = vpop.f32.mrb[0].mxu0
        %v1130 = vadd.f32 0.0, %v1129
        %v1131 = vpop.f32.mrb[0].mxu0
        %1132 = vmatprep.mubr.bf16.mxu0 0
        %1133 = vmatmul.mubr.bf16.gmra.mrb[0].mxu0 %v1070
        %v1134 = vpop.f32.mrb[0].mxu0
        %v1135 = vadd.f32 0.0, %v1134
        %v1136 = vpop.f32.mrb[0].mxu0
        %v1137 = vpop.f32.mrb[0].mxu0
        %v1138 = vadd.f32 0.0, %v1137
        %v1139 = vpop.f32.mrb[0].mxu0
        %1140 = vmatprep.mubr.bf16.mxu0 0
        %1141 = vmatmul.mubr.bf16.gmra.mrb[0].mxu0 %v1071
        %v1142 = vpop.f32.mrb[0].mxu0
        %v1143 = vadd.f32 0.0, %v1142
        %v1144 = vpop.f32.mrb[0].mxu0
        %v1145 = vpop.f32.mrb[0].mxu0
        %v1146 = vadd.f32 0.0, %v1145
        %v1147 = vpop.f32.mrb[0].mxu0
        %1148 = vmatprep.mubr.bf16.mxu0 0
        %1149 = vmatmul.mubr.bf16.gmra.mrb[0].mxu0 %v1072
        %v1150 = vpop.f32.mrb[0].mxu0
        %v1151 = vadd.f32 0.0, %v1150
        %v1152 = vpop.f32.mrb[0].mxu0
        %v1153 = vpop.f32.mrb[0].mxu0
        %v1154 = vadd.f32 0.0, %v1153
        %v1155 = vpop.f32.mrb[0].mxu0
        %1156 = vmatprep.mubr.bf16.mxu0 0
        %1157 = vmatmul.mubr.bf16.gmra.mrb[0].mxu0 %v1073
        %v1158 = vpop.f32.mrb[0].mxu0
        %v1159 = vadd.f32 0.0, %v1158
        %v1160 = vpop.f32.mrb[0].mxu0
        %v1161 = vpop.f32.mrb[0].mxu0
        %v1162 = vadd.f32 0.0, %v1161
        %v1163 = vpop.f32.mrb[0].mxu0
        %1164 = vmatprep.mubr.bf16.mxu0 0
        %1165 = vmatmul.mubr.bf16.gmra.mrb[0].mxu0 %v1074
        %v1166 = vpop.f32.mrb[0].mxu0
        %v1167 = vadd.f32 0.0, %v1166
        %v1168 = vpop.f32.mrb[0].mxu0
        %v1169 = vpop.f32.mrb[0].mxu0
        %v1170 = vadd.f32 0.0, %v1169
        %v1171 = vpop.f32.mrb[0].mxu0
        %1172 = vmatprep.mubr.bf16.mxu0 0
        %1173 = vmatmul.mubr.bf16.gmra.mrb[0].mxu0 %v1075
        %v1174 = vpop.f32.mrb[0].mxu0
        %v1175 = vadd.f32 0.0, %v1174
        %v1176 = vpop.f32.mrb[0].mxu0
        %v1177 = vpop.f32.mrb[0].mxu0
        %v1178 = vadd.f32 0.0, %v1177
        %v1179 = vpop.f32.mrb[0].mxu0
        %1180 = vmatprep.mubr.bf16.mxu0 0
        %1181 = vmatmul.mubr.bf16.gmra.mrb[0].mxu0 %v1076
        %v1182 = vpop.f32.mrb[0].mxu0
        %v1183 = vadd.f32 0.0, %v1182
        %v1184 = vpop.f32.mrb[0].mxu0
        %v1185 = vpop.f32.mrb[0].mxu0
        %v1186 = vadd.f32 0.0, %v1185
        %v1187 = vpop.f32.mrb[0].mxu0
        %1188 = vmatprep.mubr.bf16.mxu0 0
        %1189 = vmatmul.mubr.bf16.gmra.mrb[0].mxu0 %v1077
        %v1190 = vpop.f32.mrb[0].mxu0
        %v1191 = vadd.f32 0.0, %v1190
        %v1192 = vpop.f32.mrb[0].mxu0
        %v1193 = vpop.f32.mrb[0].mxu0
        %v1194 = vadd.f32 0.0, %v1193
        %v1195 = vpop.f32.mrb[0].mxu0
        %1196 = vmatprep.mubr.bf16.mxu0 0
        %1197 = vmatmul.mubr.bf16.gmra.mrb[0].mxu0 %v1078
        %v1198 = vpop.f32.mrb[0].mxu0
        %v1199 = vadd.f32 0.0, %v1198
        %v1200 = vpop.f32.mrb[0].mxu0
        %v1201 = vpop.f32.mrb[0].mxu0
        %v1202 = vadd.f32 0.0, %v1201
        %v1203 = vpop.f32.mrb[0].mxu0
        %1204 = vmatprep.mubr.bf16.mxu0 0
        %1205 = vmatmul.mubr.bf16.gmra.mrb[0].mxu0 %v1079
        %v1206 = vpop.f32.mrb[0].mxu0
        %v1207 = vadd.f32 0.0, %v1206
        %v1208 = vpop.f32.mrb[0].mxu0
        %v1209 = vpop.f32.mrb[0].mxu0
        %v1210 = vadd.f32 0.0, %v1209
        %v1211 = vpop.f32.mrb[0].mxu0
        %1212 = vmatprep.mubr.bf16.mxu0 0
        %1213 = vmatmul.mubr.bf16.gmra.mrb[0].mxu0 %v1080
        %v1214 = vpop.f32.mrb[0].mxu0
        %v1215 = vadd.f32 0.0, %v1214
        %v1216 = vpop.f32.mrb[0].mxu0
        %v1217 = vpop.f32.mrb[0].mxu0
        %v1218 = vadd.f32 0.0, %v1217
        %v1219 = vpop.f32.mrb[0].mxu0
        %1220 = vmatprep.mubr.bf16.mxu0 0
        %1221 = vmatmul.mubr.bf16.gmra.mrb[0].mxu0 %v1081
        %v1222 = vpop.f32.mrb[0].mxu0
        %v1223 = vadd.f32 0.0, %v1222
        %v1224 = vpop.f32.mrb[0].mxu0
        %v1225 = vpop.f32.mrb[0].mxu0
        %v1226 = vadd.f32 0.0, %v1225
        %v1227 = vpop.f32.mrb[0].mxu0
        %1228 = vmatprep.mubr.bf16.mxu0 0
        %1229 = vmatmul.mubr.bf16.gmra.mrb[0].mxu0 %v1082
        %v1230 = vpop.f32.mrb[0].mxu0
        %v1231 = vadd.f32 0.0, %v1230
        %v1232 = vpop.f32.mrb[0].mxu0
        %v1233 = vpop.f32.mrb[0].mxu0
        %v1234 = vadd.f32 0.0, %v1233
        %v1235 = vpop.f32.mrb[0].mxu0
        %1236 = vmatprep.mubr.bf16.mxu0 0
        %1237 = vmatmul.mubr.bf16.gmra.mrb[0].mxu0 %v1083
        %v1238 = vpop.f32.mrb[0].mxu0
        %v1239 = vadd.f32 0.0, %v1238
        %v1240 = vpop.f32.mrb[0].mxu0
        %v1241 = vpop.f32.mrb[0].mxu0
        %v1242 = vadd.f32 0.0, %v1241
        %v1243 = vpop.f32.mrb[0].mxu0
        %1244 = vdwg.mxu0
        %v1245 = vadd.f32 %v394, %v1119
        %v1246 = vadd.f32 %v395, %v1122
        %v1247 = vadd.f32 %v396, %v1127
        %v1248 = vadd.f32 %v397, %v1130
        %v1249 = vadd.f32 %v398, %v1135
        %v1250 = vadd.f32 %v399, %v1138
        %v1251 = vadd.f32 %v400, %v1143
        %v1252 = vadd.f32 %v401, %v1146
        %v1253 = vadd.f32 %v402, %v1151
        %v1254 = vadd.f32 %v403, %v1154
        %v1255 = vadd.f32 %v404, %v1159
        %v1256 = vadd.f32 %v405, %v1162
        %v1257 = vadd.f32 %v406, %v1167
        %v1258 = vadd.f32 %v407, %v1170
        %v1259 = vadd.f32 %v408, %v1175
        %v1260 = vadd.f32 %v409, %v1178
        %v1261 = vadd.f32 %v410, %v1183
        %v1262 = vadd.f32 %v411, %v1186
        %v1263 = vadd.f32 %v412, %v1191
        %v1264 = vadd.f32 %v413, %v1194
        %v1265 = vadd.f32 %v414, %v1199
        %v1266 = vadd.f32 %v415, %v1202
        %v1267 = vadd.f32 %v416, %v1207
        %v1268 = vadd.f32 %v417, %v1210
        %v1269 = vadd.f32 %v418, %v1215
        %v1270 = vadd.f32 %v419, %v1218
        %v1271 = vadd.f32 %v420, %v1223
        %v1272 = vadd.f32 %v421, %v1226
        %v1273 = vadd.f32 %v422, %v1231
        %v1274 = vadd.f32 %v423, %v1234
        %v1275 = vadd.f32 %v424, %v1239
        %v1276 = vadd.f32 %v425, %v1242
        %v1277 = vpack.c.bf16 %v1246, %v1245
        %v1278 = vpack.c.bf16 %v1248, %v1247
        %v1279 = vpack.c.bf16 %v1250, %v1249
        %v1280 = vpack.c.bf16 %v1252, %v1251
        %v1281 = vpack.c.bf16 %v1254, %v1253
        %v1282 = vpack.c.bf16 %v1256, %v1255
        %v1283 = vpack.c.bf16 %v1258, %v1257
        %v1284 = vpack.c.bf16 %v1260, %v1259
        %v1285 = vpack.c.bf16 %v1262, %v1261
        %v1286 = vpack.c.bf16 %v1264, %v1263
        %v1287 = vpack.c.bf16 %v1266, %v1265
        %v1288 = vpack.c.bf16 %v1268, %v1267
        %v1289 = vpack.c.bf16 %v1270, %v1269
        %v1290 = vpack.c.bf16 %v1272, %v1271
        %v1291 = vpack.c.bf16 %v1274, %v1273
        %v1292 = vpack.c.bf16 %v1276, %v1275
        %v1293 = vld [vmem:[%s4] sm:$0xf]
        %v1294 = vld [vmem:[%s4 + $0x4] sm:$0xf]
        %v1295 = vld [vmem:[%s4 + $0x8] sm:$0xf]
        %v1296 = vld [vmem:[%s4 + $0xc] sm:$0xf]
        %v1297 = vld [vmem:[%s4 + $0x10] sm:$0xf]
        %v1298 = vld [vmem:[%s4 + $0x14] sm:$0xf]
        %v1299 = vld [vmem:[%s4 + $0x18] sm:$0xf]
        %v1300 = vld [vmem:[%s4 + $0x1c] sm:$0xf]
        %v1301 = vld [vmem:[%s4 + $0x20] sm:$0xf]
        %v1302 = vld [vmem:[%s4 + $0x24] sm:$0xf]
        %v1303 = vld [vmem:[%s4 + $0x28] sm:$0xf]
        %v1304 = vld [vmem:[%s4 + $0x2c] sm:$0xf]
        %v1305 = vld [vmem:[%s4 + $0x30] sm:$0xf]
        %v1306 = vld [vmem:[%s4 + $0x34] sm:$0xf]
        %v1307 = vld [vmem:[%s4 + $0x38] sm:$0xf]
        %v1308 = vld [vmem:[%s4 + $0x3c] sm:$0xf]
        %v1309 = vld [vmem:[%s5] sm:$0x1]
        %v1311 = vlaneseq
        %v1312 = vshrl.u32 %v1311, 7
        %v1313 = vsub.s32 0, %v1312
        %v1314 = vrot.slane %v1309, %v1313
        %v1332 = vunpack.c.l.b16 %v1293
        %v1333 = vunpack.c.l.b16 %v1294
        %v1334 = vunpack.c.l.b16 %v1295
        %v1335 = vunpack.c.l.b16 %v1296
        %v1336 = vunpack.c.l.b16 %v1297
        %v1337 = vunpack.c.l.b16 %v1298
        %v1338 = vunpack.c.l.b16 %v1299
        %v1339 = vunpack.c.l.b16 %v1300
        %v1340 = vunpack.c.l.b16 %v1301
        %v1341 = vunpack.c.l.b16 %v1302
        %v1342 = vunpack.c.l.b16 %v1303
        %v1343 = vunpack.c.l.b16 %v1304
        %v1344 = vunpack.c.l.b16 %v1305
        %v1345 = vunpack.c.l.b16 %v1306
        %v1346 = vunpack.c.l.b16 %v1307
        %v1347 = vunpack.c.l.b16 %v1308
        %v1348 = vpack.c.b16 %v1333, %v1332
        %v1349 = vpack.c.b16 %v1335, %v1334
        %v1350 = vpack.c.b16 %v1337, %v1336
        %v1351 = vpack.c.b16 %v1339, %v1338
        %v1352 = vpack.c.b16 %v1341, %v1340
        %v1353 = vpack.c.b16 %v1343, %v1342
        %v1354 = vpack.c.b16 %v1345, %v1344
        %v1355 = vpack.c.b16 %v1347, %v1346
        %1364 = vmatprep.subr.bf16.mxu0 0
        %1365 = vmatpush1.bf16.msra.mxu0 %v1348
        %1366 = vmatprep.subr.bf16.mxu0 0
        %1367 = vmatpush1.bf16.msra.mxu0 %v1349
        %1368 = vmatprep.subr.bf16.mxu0 0
        %1369 = vmatpush1.bf16.msra.mxu0 %v1350
        %1370 = vmatprep.subr.bf16.mxu0 0
        %1371 = vmatpush1.bf16.msra.mxu0 %v1351
        %1372 = vmatprep.subr.bf16.mxu0 0
        %1373 = vmatpush1.bf16.msra.mxu0 %v1352
        %1374 = vmatprep.subr.bf16.mxu0 0
        %1375 = vmatpush1.bf16.msra.mxu0 %v1353
        %1376 = vmatprep.subr.bf16.mxu0 0
        %1377 = vmatpush1.bf16.msra.mxu0 %v1354
        %1378 = vmatprep.subr.bf16.mxu0 0
        %1379 = vmatpush1.bf16.msra.mxu0 %v1355
        %1380 = vmatprep.subr.bf16.mxu0 0
        %1381 = vmatpush1.bf16.msra.mxu0 0
        %1382 = vmatprep.subr.bf16.mxu0 0
        %1383 = vmatpush1.bf16.msra.mxu0 0
        %1384 = vmatprep.subr.bf16.mxu0 0
        %1385 = vmatpush1.bf16.msra.mxu0 0
        %1386 = vmatprep.subr.bf16.mxu0 0
        %1387 = vmatpush1.bf16.msra.mxu0 0
        %1388 = vmatprep.subr.bf16.mxu0 0
        %1389 = vmatpush1.bf16.msra.mxu0 0
        %1390 = vmatprep.subr.bf16.mxu0 0
        %1391 = vmatpush1.bf16.msra.mxu0 0
        %1392 = vmatprep.subr.bf16.mxu0 0
        %1393 = vmatpush1.bf16.msra.mxu0 0
        %1394 = vmatprep.subr.bf16.mxu0 0
        %1395 = vmatpush1.bf16.msra.mxu0 0
        %1396 = vmatprep.mubr.bf16.mxu0 0
        %1397 = vmatmul.mubr.bf16.gmra.mrb[0].mxu0 %v1277
        %v1398 = vpop.f32.mrb[0].mxu0
        %v1399 = vadd.f32 %v1314, %v1398
        %v1400 = vpop.f32.mrb[0].mxu0
        %v1401 = vpop.f32.mrb[0].mxu0
        %v1402 = vadd.f32 %v1314, %v1401
        %v1403 = vpop.f32.mrb[0].mxu0
        %1404 = vmatprep.mubr.bf16.mxu0 0
        %1405 = vmatmul.mubr.bf16.gmra.mrb[0].mxu0 %v1278
        %v1406 = vpop.f32.mrb[0].mxu0
        %v1407 = vadd.f32 %v1314, %v1406
        %v1408 = vpop.f32.mrb[0].mxu0
        %v1409 = vpop.f32.mrb[0].mxu0
        %v1410 = vadd.f32 %v1314, %v1409
        %v1411 = vpop.f32.mrb[0].mxu0
        %1412 = vmatprep.mubr.bf16.mxu0 0
        %1413 = vmatmul.mubr.bf16.gmra.mrb[0].mxu0 %v1279
        %v1414 = vpop.f32.mrb[0].mxu0
        %v1415 = vadd.f32 %v1314, %v1414
        %v1416 = vpop.f32.mrb[0].mxu0
        %v1417 = vpop.f32.mrb[0].mxu0
        %v1418 = vadd.f32 %v1314, %v1417
        %v1419 = vpop.f32.mrb[0].mxu0
        %1420 = vmatprep.mubr.bf16.mxu0 0
        %1421 = vmatmul.mubr.bf16.gmra.mrb[0].mxu0 %v1280
        %v1422 = vpop.f32.mrb[0].mxu0
        %v1423 = vadd.f32 %v1314, %v1422
        %v1424 = vpop.f32.mrb[0].mxu0
        %v1425 = vpop.f32.mrb[0].mxu0
        %v1426 = vadd.f32 %v1314, %v1425
        %v1427 = vpop.f32.mrb[0].mxu0
        %1428 = vmatprep.mubr.bf16.mxu0 0
        %1429 = vmatmul.mubr.bf16.gmra.mrb[0].mxu0 %v1281
        %v1430 = vpop.f32.mrb[0].mxu0
        %v1431 = vadd.f32 %v1314, %v1430
        %v1432 = vpop.f32.mrb[0].mxu0
        %v1433 = vpop.f32.mrb[0].mxu0
        %v1434 = vadd.f32 %v1314, %v1433
        %v1435 = vpop.f32.mrb[0].mxu0
        %1436 = vmatprep.mubr.bf16.mxu0 0
        %1437 = vmatmul.mubr.bf16.gmra.mrb[0].mxu0 %v1282
        %v1438 = vpop.f32.mrb[0].mxu0
        %v1439 = vadd.f32 %v1314, %v1438
        %v1440 = vpop.f32.mrb[0].mxu0
        %v1441 = vpop.f32.mrb[0].mxu0
        %v1442 = vadd.f32 %v1314, %v1441
        %v1443 = vpop.f32.mrb[0].mxu0
        %1444 = vmatprep.mubr.bf16.mxu0 0
        %1445 = vmatmul.mubr.bf16.gmra.mrb[0].mxu0 %v1283
        %v1446 = vpop.f32.mrb[0].mxu0
        %v1447 = vadd.f32 %v1314, %v1446
        %v1448 = vpop.f32.mrb[0].mxu0
        %v1449 = vpop.f32.mrb[0].mxu0
        %v1450 = vadd.f32 %v1314, %v1449
        %v1451 = vpop.f32.mrb[0].mxu0
        %1452 = vmatprep.mubr.bf16.mxu0 0
        %1453 = vmatmul.mubr.bf16.gmra.mrb[0].mxu0 %v1284
        %v1454 = vpop.f32.mrb[0].mxu0
        %v1455 = vadd.f32 %v1314, %v1454
        %v1456 = vpop.f32.mrb[0].mxu0
        %v1457 = vpop.f32.mrb[0].mxu0
        %v1458 = vadd.f32 %v1314, %v1457
        %v1459 = vpop.f32.mrb[0].mxu0
        %1460 = vmatprep.mubr.bf16.mxu0 0
        %1461 = vmatmul.mubr.bf16.gmra.mrb[0].mxu0 %v1285
        %v1462 = vpop.f32.mrb[0].mxu0
        %v1463 = vadd.f32 %v1314, %v1462
        %v1464 = vpop.f32.mrb[0].mxu0
        %v1465 = vpop.f32.mrb[0].mxu0
        %v1466 = vadd.f32 %v1314, %v1465
        %v1467 = vpop.f32.mrb[0].mxu0
        %1468 = vmatprep.mubr.bf16.mxu0 0
        %1469 = vmatmul.mubr.bf16.gmra.mrb[0].mxu0 %v1286
        %v1470 = vpop.f32.mrb[0].mxu0
        %v1471 = vadd.f32 %v1314, %v1470
        %v1472 = vpop.f32.mrb[0].mxu0
        %v1473 = vpop.f32.mrb[0].mxu0
        %v1474 = vadd.f32 %v1314, %v1473
        %v1475 = vpop.f32.mrb[0].mxu0
        %1476 = vmatprep.mubr.bf16.mxu0 0
        %1477 = vmatmul.mubr.bf16.gmra.mrb[0].mxu0 %v1287
        %v1478 = vpop.f32.mrb[0].mxu0
        %v1479 = vadd.f32 %v1314, %v1478
        %v1480 = vpop.f32.mrb[0].mxu0
        %v1481 = vpop.f32.mrb[0].mxu0
        %v1482 = vadd.f32 %v1314, %v1481
        %v1483 = vpop.f32.mrb[0].mxu0
        %1484 = vmatprep.mubr.bf16.mxu0 0
        %1485 = vmatmul.mubr.bf16.gmra.mrb[0].mxu0 %v1288
        %v1486 = vpop.f32.mrb[0].mxu0
        %v1487 = vadd.f32 %v1314, %v1486
        %v1488 = vpop.f32.mrb[0].mxu0
        %v1489 = vpop.f32.mrb[0].mxu0
        %v1490 = vadd.f32 %v1314, %v1489
        %v1491 = vpop.f32.mrb[0].mxu0
        %1492 = vmatprep.mubr.bf16.mxu0 0
        %1493 = vmatmul.mubr.bf16.gmra.mrb[0].mxu0 %v1289
        %v1494 = vpop.f32.mrb[0].mxu0
        %v1495 = vadd.f32 %v1314, %v1494
        %v1496 = vpop.f32.mrb[0].mxu0
        %v1497 = vpop.f32.mrb[0].mxu0
        %v1498 = vadd.f32 %v1314, %v1497
        %v1499 = vpop.f32.mrb[0].mxu0
        %1500 = vmatprep.mubr.bf16.mxu0 0
        %1501 = vmatmul.mubr.bf16.gmra.mrb[0].mxu0 %v1290
        %v1502 = vpop.f32.mrb[0].mxu0
        %v1503 = vadd.f32 %v1314, %v1502
        %v1504 = vpop.f32.mrb[0].mxu0
        %v1505 = vpop.f32.mrb[0].mxu0
        %v1506 = vadd.f32 %v1314, %v1505
        %v1507 = vpop.f32.mrb[0].mxu0
        %1508 = vmatprep.mubr.bf16.mxu0 0
        %1509 = vmatmul.mubr.bf16.gmra.mrb[0].mxu0 %v1291
        %v1510 = vpop.f32.mrb[0].mxu0
        %v1511 = vadd.f32 %v1314, %v1510
        %v1512 = vpop.f32.mrb[0].mxu0
        %v1513 = vpop.f32.mrb[0].mxu0
        %v1514 = vadd.f32 %v1314, %v1513
        %v1515 = vpop.f32.mrb[0].mxu0
        %1516 = vmatprep.mubr.bf16.mxu0 0
        %1517 = vmatmul.mubr.bf16.gmra.mrb[0].mxu0 %v1292
        %v1518 = vpop.f32.mrb[0].mxu0
        %v1519 = vadd.f32 %v1314, %v1518
        %v1520 = vpop.f32.mrb[0].mxu0
        %v1521 = vpop.f32.mrb[0].mxu0
        %v1522 = vadd.f32 %v1314, %v1521
        %v1523 = vpop.f32.mrb[0].mxu0
        %1524 = vdwg.mxu0
        %v1525 = vtanh.pop %v1399
        %v1526 = vtanh.pop %v1402
        %v1527 = vtanh.pop %v1407
        %v1528 = vtanh.pop %v1410
        %v1529 = vtanh.pop %v1415
        %v1530 = vtanh.pop %v1418
        %v1531 = vtanh.pop %v1423
        %v1532 = vtanh.pop %v1426
        %v1533 = vtanh.pop %v1431
        %v1534 = vtanh.pop %v1434
        %v1535 = vtanh.pop %v1439
        %v1536 = vtanh.pop %v1442
        %v1537 = vtanh.pop %v1447
        %v1538 = vtanh.pop %v1450
        %v1539 = vtanh.pop %v1455
        %v1540 = vtanh.pop %v1458
        %v1541 = vtanh.pop %v1463
        %v1542 = vtanh.pop %v1466
        %v1543 = vtanh.pop %v1471
        %v1544 = vtanh.pop %v1474
        %v1545 = vtanh.pop %v1479
        %v1546 = vtanh.pop %v1482
        %v1547 = vtanh.pop %v1487
        %v1548 = vtanh.pop %v1490
        %v1549 = vtanh.pop %v1495
        %v1550 = vtanh.pop %v1498
        %v1551 = vtanh.pop %v1503
        %v1552 = vtanh.pop %v1506
        %v1553 = vtanh.pop %v1511
        %v1554 = vtanh.pop %v1514
        %v1555 = vtanh.pop %v1519
        %v1556 = vtanh.pop %v1522
        %v1557 = vpack.c.bf16 %v1526, %v1525
        %v1558 = vpack.c.bf16 %v1528, %v1527
        %v1559 = vpack.c.bf16 %v1530, %v1529
        %v1560 = vpack.c.bf16 %v1532, %v1531
        %v1561 = vpack.c.bf16 %v1534, %v1533
        %v1562 = vpack.c.bf16 %v1536, %v1535
        %v1563 = vpack.c.bf16 %v1538, %v1537
        %v1564 = vpack.c.bf16 %v1540, %v1539
        %v1565 = vpack.c.bf16 %v1542, %v1541
        %v1566 = vpack.c.bf16 %v1544, %v1543
        %v1567 = vpack.c.bf16 %v1546, %v1545
        %v1568 = vpack.c.bf16 %v1548, %v1547
        %v1569 = vpack.c.bf16 %v1550, %v1549
        %v1570 = vpack.c.bf16 %v1552, %v1551
        %v1571 = vpack.c.bf16 %v1554, %v1553
        %v1572 = vpack.c.bf16 %v1556, %v1555
        %v1573 = vld [vmem:[%s6] sm:$0xf]
        %v1574 = vld [vmem:[%s6 + $0x4] sm:$0xf]
        %v1575 = vld [vmem:[%s6 + $0x8] sm:$0xf]
        %v1576 = vld [vmem:[%s6 + $0xc] sm:$0xf]
        %v1577 = vld [vmem:[%s6 + $0x10] sm:$0xf]
        %v1578 = vld [vmem:[%s6 + $0x14] sm:$0xf]
        %v1579 = vld [vmem:[%s6 + $0x18] sm:$0xf]
        %v1580 = vld [vmem:[%s6 + $0x1c] sm:$0xf]
        %v1581 = vld [vmem:[%s6 + $0x20] sm:$0xf]
        %v1582 = vld [vmem:[%s6 + $0x24] sm:$0xf]
        %v1583 = vld [vmem:[%s6 + $0x28] sm:$0xf]
        %v1584 = vld [vmem:[%s6 + $0x2c] sm:$0xf]
        %v1585 = vld [vmem:[%s6 + $0x30] sm:$0xf]
        %v1586 = vld [vmem:[%s6 + $0x34] sm:$0xf]
        %v1587 = vld [vmem:[%s6 + $0x38] sm:$0xf]
        %v1588 = vld [vmem:[%s6 + $0x3c] sm:$0xf]
        %1590 = vset.pattern.permute.xlu0 0
        %1591 = vperm.xlu0 %1590, %v501
        %v1592 = vpop.permute.xlu0 %1591
        %1595 = vset.pattern.permute.xlu0 0
        %1596 = vperm.xlu0 %1595, %v502
        %v1597 = vpop.permute.xlu0 %1596
        %1600 = vset.pattern.permute.xlu0 0
        %1601 = vperm.xlu0 %1600, %v503
        %v1602 = vpop.permute.xlu0 %1601
        %1605 = vset.pattern.permute.xlu0 0
        %1606 = vperm.xlu0 %1605, %v504
        %v1607 = vpop.permute.xlu0 %1606
        %1610 = vset.pattern.permute.xlu0 0
        %1611 = vperm.xlu0 %1610, %v505
        %v1612 = vpop.permute.xlu0 %1611
        %1615 = vset.pattern.permute.xlu0 0
        %1616 = vperm.xlu0 %1615, %v506
        %v1617 = vpop.permute.xlu0 %1616
        %1620 = vset.pattern.permute.xlu0 0
        %1621 = vperm.xlu0 %1620, %v507
        %v1622 = vpop.permute.xlu0 %1621
        %1625 = vset.pattern.permute.xlu0 0
        %1626 = vperm.xlu0 %1625, %v508
        %v1627 = vpop.permute.xlu0 %1626
        %1630 = vset.pattern.permute.xlu0 0
        %1631 = vperm.xlu0 %1630, %v509
        %v1632 = vpop.permute.xlu0 %1631
        %1635 = vset.pattern.permute.xlu0 0
        %1636 = vperm.xlu0 %1635, %v510
        %v1637 = vpop.permute.xlu0 %1636
        %1640 = vset.pattern.permute.xlu0 0
        %1641 = vperm.xlu0 %1640, %v511
        %v1642 = vpop.permute.xlu0 %1641
        %1645 = vset.pattern.permute.xlu0 0
        %1646 = vperm.xlu0 %1645, %v512
        %v1647 = vpop.permute.xlu0 %1646
        %1650 = vset.pattern.permute.xlu0 0
        %1651 = vperm.xlu0 %1650, %v513
        %v1652 = vpop.permute.xlu0 %1651
        %1655 = vset.pattern.permute.xlu0 0
        %1656 = vperm.xlu0 %1655, %v514
        %v1657 = vpop.permute.xlu0 %1656
        %1660 = vset.pattern.permute.xlu0 0
        %1661 = vperm.xlu0 %1660, %v515
        %v1662 = vpop.permute.xlu0 %1661
        %1665 = vset.pattern.permute.xlu0 0
        %1666 = vperm.xlu0 %1665, %v516
        %v1667 = vpop.permute.xlu0 %1666
        %1670 = vset.pattern.permute.xlu0 0
        %1671 = vperm.xlu0 %1670, %v517
        %v1672 = vpop.permute.xlu0 %1671
        %1675 = vset.pattern.permute.xlu0 0
        %1676 = vperm.xlu0 %1675, %v518
        %v1677 = vpop.permute.xlu0 %1676
        %1680 = vset.pattern.permute.xlu0 0
        %1681 = vperm.xlu0 %1680, %v519
        %v1682 = vpop.permute.xlu0 %1681
        %1685 = vset.pattern.permute.xlu0 0
        %1686 = vperm.xlu0 %1685, %v520
        %v1687 = vpop.permute.xlu0 %1686
        %1690 = vset.pattern.permute.xlu0 0
        %1691 = vperm.xlu0 %1690, %v521
        %v1692 = vpop.permute.xlu0 %1691
        %1695 = vset.pattern.permute.xlu0 0
        %1696 = vperm.xlu0 %1695, %v522
        %v1697 = vpop.permute.xlu0 %1696
        %1700 = vset.pattern.permute.xlu0 0
        %1701 = vperm.xlu0 %1700, %v523
        %v1702 = vpop.permute.xlu0 %1701
        %1705 = vset.pattern.permute.xlu0 0
        %1706 = vperm.xlu0 %1705, %v524
        %v1707 = vpop.permute.xlu0 %1706
        %1710 = vset.pattern.permute.xlu0 0
        %1711 = vperm.xlu0 %1710, %v525
        %v1712 = vpop.permute.xlu0 %1711
        %1715 = vset.pattern.permute.xlu0 0
        %1716 = vperm.xlu0 %1715, %v526
        %v1717 = vpop.permute.xlu0 %1716
        %1720 = vset.pattern.permute.xlu0 0
        %1721 = vperm.xlu0 %1720, %v527
        %v1722 = vpop.permute.xlu0 %1721
        %1725 = vset.pattern.permute.xlu0 0
        %1726 = vperm.xlu0 %1725, %v528
        %v1727 = vpop.permute.xlu0 %1726
        %1730 = vset.pattern.permute.xlu0 0
        %1731 = vperm.xlu0 %1730, %v529
        %v1732 = vpop.permute.xlu0 %1731
        %1735 = vset.pattern.permute.xlu0 0
        %1736 = vperm.xlu0 %1735, %v530
        %v1737 = vpop.permute.xlu0 %1736
        %1740 = vset.pattern.permute.xlu0 0
        %1741 = vperm.xlu0 %1740, %v531
        %v1742 = vpop.permute.xlu0 %1741
        %1745 = vset.pattern.permute.xlu0 0
        %1746 = vperm.xlu0 %1745, %v532
        %v1747 = vpop.permute.xlu0 %1746
        %v1765 = vunpack.c.l.b16 %v1573
        %v1766 = vunpack.c.l.b16 %v1574
        %v1767 = vunpack.c.l.b16 %v1575
        %v1768 = vunpack.c.l.b16 %v1576
        %v1769 = vunpack.c.l.b16 %v1577
        %v1770 = vunpack.c.l.b16 %v1578
        %v1771 = vunpack.c.l.b16 %v1579
        %v1772 = vunpack.c.l.b16 %v1580
        %v1773 = vunpack.c.l.b16 %v1581
        %v1774 = vunpack.c.l.b16 %v1582
        %v1775 = vunpack.c.l.b16 %v1583
        %v1776 = vunpack.c.l.b16 %v1584
        %v1777 = vunpack.c.l.b16 %v1585
        %v1778 = vunpack.c.l.b16 %v1586
        %v1779 = vunpack.c.l.b16 %v1587
        %v1780 = vunpack.c.l.b16 %v1588
        %v1781 = vpack.c.b16 %v1766, %v1765
        %v1782 = vpack.c.b16 %v1768, %v1767
        %v1783 = vpack.c.b16 %v1770, %v1769
        %v1784 = vpack.c.b16 %v1772, %v1771
        %v1785 = vpack.c.b16 %v1774, %v1773
        %v1786 = vpack.c.b16 %v1776, %v1775
        %v1787 = vpack.c.b16 %v1778, %v1777
        %v1788 = vpack.c.b16 %v1780, %v1779
        %1797 = vmatprep.subr.bf16.mxu0 0
        %1798 = vmatpush1.bf16.msra.mxu0 %v1781
        %1799 = vmatprep.subr.bf16.mxu0 0
        %1800 = vmatpush1.bf16.msra.mxu0 %v1782
        %1801 = vmatprep.subr.bf16.mxu0 0
        %1802 = vmatpush1.bf16.msra.mxu0 %v1783
        %1803 = vmatprep.subr.bf16.mxu0 0
        %1804 = vmatpush1.bf16.msra.mxu0 %v1784
        %1805 = vmatprep.subr.bf16.mxu0 0
        %1806 = vmatpush1.bf16.msra.mxu0 %v1785
        %1807 = vmatprep.subr.bf16.mxu0 0
        %1808 = vmatpush1.bf16.msra.mxu0 %v1786
        %1809 = vmatprep.subr.bf16.mxu0 0
        %1810 = vmatpush1.bf16.msra.mxu0 %v1787
        %1811 = vmatprep.subr.bf16.mxu0 0
        %1812 = vmatpush1.bf16.msra.mxu0 %v1788
        %1813 = vmatprep.subr.bf16.mxu0 0
        %1814 = vmatpush1.bf16.msra.mxu0 0
        %1815 = vmatprep.subr.bf16.mxu0 0
        %1816 = vmatpush1.bf16.msra.mxu0 0
        %1817 = vmatprep.subr.bf16.mxu0 0
        %1818 = vmatpush1.bf16.msra.mxu0 0
        %1819 = vmatprep.subr.bf16.mxu0 0
        %1820 = vmatpush1.bf16.msra.mxu0 0
        %1821 = vmatprep.subr.bf16.mxu0 0
        %1822 = vmatpush1.bf16.msra.mxu0 0
        %1823 = vmatprep.subr.bf16.mxu0 0
        %1824 = vmatpush1.bf16.msra.mxu0 0
        %1825 = vmatprep.subr.bf16.mxu0 0
        %1826 = vmatpush1.bf16.msra.mxu0 0
        %1827 = vmatprep.subr.bf16.mxu0 0
        %1828 = vmatpush1.bf16.msra.mxu0 0
        %1829 = vmatprep.mubr.bf16.mxu0 0
        %1830 = vmatmul.mubr.bf16.gmra.mrb[0].mxu0 %v1557
        %v1831 = vpop.f32.mrb[0].mxu0
        %v1832 = vadd.f32 %v1592, %v1831
        %v1833 = vpop.f32.mrb[0].mxu0
        %v1834 = vpop.f32.mrb[0].mxu0
        %v1835 = vadd.f32 %v1597, %v1834
        %v1836 = vpop.f32.mrb[0].mxu0
        %1837 = vmatprep.mubr.bf16.mxu0 0
        %1838 = vmatmul.mubr.bf16.gmra.mrb[0].mxu0 %v1558
        %v1839 = vpop.f32.mrb[0].mxu0
        %v1840 = vadd.f32 %v1602, %v1839
        %v1841 = vpop.f32.mrb[0].mxu0
        %v1842 = vpop.f32.mrb[0].mxu0
        %v1843 = vadd.f32 %v1607, %v1842
        %v1844 = vpop.f32.mrb[0].mxu0
        %1845 = vmatprep.mubr.bf16.mxu0 0
        %1846 = vmatmul.mubr.bf16.gmra.mrb[0].mxu0 %v1559
        %v1847 = vpop.f32.mrb[0].mxu0
        %v1848 = vadd.f32 %v1612, %v1847
        %v1849 = vpop.f32.mrb[0].mxu0
        %v1850 = vpop.f32.mrb[0].mxu0
        %v1851 = vadd.f32 %v1617, %v1850
        %v1852 = vpop.f32.mrb[0].mxu0
        %1853 = vmatprep.mubr.bf16.mxu0 0
        %1854 = vmatmul.mubr.bf16.gmra.mrb[0].mxu0 %v1560
        %v1855 = vpop.f32.mrb[0].mxu0
        %v1856 = vadd.f32 %v1622, %v1855
        %v1857 = vpop.f32.mrb[0].mxu0
        %v1858 = vpop.f32.mrb[0].mxu0
        %v1859 = vadd.f32 %v1627, %v1858
        %v1860 = vpop.f32.mrb[0].mxu0
        %1861 = vmatprep.mubr.bf16.mxu0 0
        %1862 = vmatmul.mubr.bf16.gmra.mrb[0].mxu0 %v1561
        %v1863 = vpop.f32.mrb[0].mxu0
        %v1864 = vadd.f32 %v1632, %v1863
        %v1865 = vpop.f32.mrb[0].mxu0
        %v1866 = vpop.f32.mrb[0].mxu0
        %v1867 = vadd.f32 %v1637, %v1866
        %v1868 = vpop.f32.mrb[0].mxu0
        %1869 = vmatprep.mubr.bf16.mxu0 0
        %1870 = vmatmul.mubr.bf16.gmra.mrb[0].mxu0 %v1562
        %v1871 = vpop.f32.mrb[0].mxu0
        %v1872 = vadd.f32 %v1642, %v1871
        %v1873 = vpop.f32.mrb[0].mxu0
        %v1874 = vpop.f32.mrb[0].mxu0
        %v1875 = vadd.f32 %v1647, %v1874
        %v1876 = vpop.f32.mrb[0].mxu0
        %1877 = vmatprep.mubr.bf16.mxu0 0
        %1878 = vmatmul.mubr.bf16.gmra.mrb[0].mxu0 %v1563
        %v1879 = vpop.f32.mrb[0].mxu0
        %v1880 = vadd.f32 %v1652, %v1879
        %v1881 = vpop.f32.mrb[0].mxu0
        %v1882 = vpop.f32.mrb[0].mxu0
        %v1883 = vadd.f32 %v1657, %v1882
        %v1884 = vpop.f32.mrb[0].mxu0
        %1885 = vmatprep.mubr.bf16.mxu0 0
        %1886 = vmatmul.mubr.bf16.gmra.mrb[0].mxu0 %v1564
        %v1887 = vpop.f32.mrb[0].mxu0
        %v1888 = vadd.f32 %v1662, %v1887
        %v1889 = vpop.f32.mrb[0].mxu0
        %v1890 = vpop.f32.mrb[0].mxu0
        %v1891 = vadd.f32 %v1667, %v1890
        %v1892 = vpop.f32.mrb[0].mxu0
        %1893 = vmatprep.mubr.bf16.mxu0 0
        %1894 = vmatmul.mubr.bf16.gmra.mrb[0].mxu0 %v1565
        %v1895 = vpop.f32.mrb[0].mxu0
        %v1896 = vadd.f32 %v1672, %v1895
        %v1897 = vpop.f32.mrb[0].mxu0
        %v1898 = vpop.f32.mrb[0].mxu0
        %v1899 = vadd.f32 %v1677, %v1898
        %v1900 = vpop.f32.mrb[0].mxu0
        %1901 = vmatprep.mubr.bf16.mxu0 0
        %1902 = vmatmul.mubr.bf16.gmra.mrb[0].mxu0 %v1566
        %v1903 = vpop.f32.mrb[0].mxu0
        %v1904 = vadd.f32 %v1682, %v1903
        %v1905 = vpop.f32.mrb[0].mxu0
        %v1906 = vpop.f32.mrb[0].mxu0
        %v1907 = vadd.f32 %v1687, %v1906
        %v1908 = vpop.f32.mrb[0].mxu0
        %1909 = vmatprep.mubr.bf16.mxu0 0
        %1910 = vmatmul.mubr.bf16.gmra.mrb[0].mxu0 %v1567
        %v1911 = vpop.f32.mrb[0].mxu0
        %v1912 = vadd.f32 %v1692, %v1911
        %v1913 = vpop.f32.mrb[0].mxu0
        %v1914 = vpop.f32.mrb[0].mxu0
        %v1915 = vadd.f32 %v1697, %v1914
        %v1916 = vpop.f32.mrb[0].mxu0
        %1917 = vmatprep.mubr.bf16.mxu0 0
        %1918 = vmatmul.mubr.bf16.gmra.mrb[0].mxu0 %v1568
        %v1919 = vpop.f32.mrb[0].mxu0
        %v1920 = vadd.f32 %v1702, %v1919
        %v1921 = vpop.f32.mrb[0].mxu0
        %v1922 = vpop.f32.mrb[0].mxu0
        %v1923 = vadd.f32 %v1707, %v1922
        %v1924 = vpop.f32.mrb[0].mxu0
        %1925 = vmatprep.mubr.bf16.mxu0 0
        %1926 = vmatmul.mubr.bf16.gmra.mrb[0].mxu0 %v1569
        %v1927 = vpop.f32.mrb[0].mxu0
        %v1928 = vadd.f32 %v1712, %v1927
        %v1929 = vpop.f32.mrb[0].mxu0
        %v1930 = vpop.f32.mrb[0].mxu0
        %v1931 = vadd.f32 %v1717, %v1930
        %v1932 = vpop.f32.mrb[0].mxu0
        %1933 = vmatprep.mubr.bf16.mxu0 0
        %1934 = vmatmul.mubr.bf16.gmra.mrb[0].mxu0 %v1570
        %v1935 = vpop.f32.mrb[0].mxu0
        %v1936 = vadd.f32 %v1722, %v1935
        %v1937 = vpop.f32.mrb[0].mxu0
        %v1938 = vpop.f32.mrb[0].mxu0
        %v1939 = vadd.f32 %v1727, %v1938
        %v1940 = vpop.f32.mrb[0].mxu0
        %1941 = vmatprep.mubr.bf16.mxu0 0
        %1942 = vmatmul.mubr.bf16.gmra.mrb[0].mxu0 %v1571
        %v1943 = vpop.f32.mrb[0].mxu0
        %v1944 = vadd.f32 %v1732, %v1943
        %v1945 = vpop.f32.mrb[0].mxu0
        %v1946 = vpop.f32.mrb[0].mxu0
        %v1947 = vadd.f32 %v1737, %v1946
        %v1948 = vpop.f32.mrb[0].mxu0
        %1949 = vmatprep.mubr.bf16.mxu0 0
        %1950 = vmatmul.mubr.bf16.gmra.mrb[0].mxu0 %v1572
        %v1951 = vpop.f32.mrb[0].mxu0
        %v1952 = vadd.f32 %v1742, %v1951
        %v1953 = vpop.f32.mrb[0].mxu0
        %v1954 = vpop.f32.mrb[0].mxu0
        %v1955 = vadd.f32 %v1747, %v1954
        %v1956 = vpop.f32.mrb[0].mxu0
        %1957 = vdwg.mxu0
        %vm1958 = vcmask 7168
        %1959 = vst.msk [vmem:[%s376] sm:$0xff] %vm1958, %v1832
        %1960 = vst.msk [vmem:[%s376 + $0x8] sm:$0xff] %vm1958, %v1835
        %1961 = vst.msk [vmem:[%s376 + $0x10] sm:$0xff] %vm1958, %v1840
        %1962 = vst.msk [vmem:[%s376 + $0x18] sm:$0xff] %vm1958, %v1843
        %1963 = vst.msk [vmem:[%s376 + $0x20] sm:$0xff] %vm1958, %v1848
        %1964 = vst.msk [vmem:[%s376 + $0x28] sm:$0xff] %vm1958, %v1851
        %1965 = vst.msk [vmem:[%s376 + $0x30] sm:$0xff] %vm1958, %v1856
        %1966 = vst.msk [vmem:[%s376 + $0x38] sm:$0xff] %vm1958, %v1859
        %1967 = vst.msk [vmem:[%s376 + $0x40] sm:$0xff] %vm1958, %v1864
        %1968 = vst.msk [vmem:[%s376 + $0x48] sm:$0xff] %vm1958, %v1867
        %1969 = vst.msk [vmem:[%s376 + $0x50] sm:$0xff] %vm1958, %v1872
        %1970 = vst.msk [vmem:[%s376 + $0x58] sm:$0xff] %vm1958, %v1875
        %1971 = vst.msk [vmem:[%s376 + $0x60] sm:$0xff] %vm1958, %v1880
        %1972 = vst.msk [vmem:[%s376 + $0x68] sm:$0xff] %vm1958, %v1883
        %1973 = vst.msk [vmem:[%s376 + $0x70] sm:$0xff] %vm1958, %v1888
        %1974 = vst.msk [vmem:[%s376 + $0x78] sm:$0xff] %vm1958, %v1891
        %1975 = vst.msk [vmem:[%s376 + $0x80] sm:$0xff] %vm1958, %v1896
        %1976 = vst.msk [vmem:[%s376 + $0x88] sm:$0xff] %vm1958, %v1899
        %1977 = vst.msk [vmem:[%s376 + $0x90] sm:$0xff] %vm1958, %v1904
        %1978 = vst.msk [vmem:[%s376 + $0x98] sm:$0xff] %vm1958, %v1907
        %1979 = vst.msk [vmem:[%s376 + $0xa0] sm:$0xff] %vm1958, %v1912
        %1980 = vst.msk [vmem:[%s376 + $0xa8] sm:$0xff] %vm1958, %v1915
        %1981 = vst.msk [vmem:[%s376 + $0xb0] sm:$0xff] %vm1958, %v1920
        %1982 = vst.msk [vmem:[%s376 + $0xb8] sm:$0xff] %vm1958, %v1923
        %1983 = vst.msk [vmem:[%s376 + $0xc0] sm:$0xff] %vm1958, %v1928
        %1984 = vst.msk [vmem:[%s376 + $0xc8] sm:$0xff] %vm1958, %v1931
        %1985 = vst.msk [vmem:[%s376 + $0xd0] sm:$0xff] %vm1958, %v1936
        %1986 = vst.msk [vmem:[%s376 + $0xd8] sm:$0xff] %vm1958, %v1939
        %1987 = vst.msk [vmem:[%s376 + $0xe0] sm:$0xff] %vm1958, %v1944
        %1988 = vst.msk [vmem:[%s376 + $0xe8] sm:$0xff] %vm1958, %v1947
        %1989 = vst.msk [vmem:[%s376 + $0xf0] sm:$0xff] %vm1958, %v1952
        %1990 = vst.msk [vmem:[%s376 + $0xf8] sm:$0xff] %vm1958, %v1955
        %1991 = vxpose.xlu0.b32.start [1/16] %v1832, 128
        %1992 = vxpose.xlu0.b32.cont [2/16] %v1835, 128
        %1993 = vxpose.xlu0.b32.cont [3/16] %v1840, 128
        %1994 = vxpose.xlu0.b32.cont [4/16] %v1843, 128
        %1995 = vxpose.xlu0.b32.cont [5/16] %v1848, 128
        %1996 = vxpose.xlu0.b32.cont [6/16] %v1851, 128
        %1997 = vxpose.xlu0.b32.cont [7/16] %v1856, 128
        %1998 = vxpose.xlu0.b32.cont [8/16] %v1859, 128
        %1999 = vxpose.xlu0.b32.cont [9/16] %v1864, 128
        %2000 = vxpose.xlu0.b32.cont [10/16] %v1867, 128
        %2001 = vxpose.xlu0.b32.cont [11/16] %v1872, 128
        %2002 = vxpose.xlu0.b32.cont [12/16] %v1875, 128
        %2003 = vxpose.xlu0.b32.cont [13/16] %v1880, 128
        %2004 = vxpose.xlu0.b32.cont [14/16] %v1883, 128
        %2005 = vxpose.xlu0.b32.cont [15/16] %v1888, 128
        %2006 = vxpose.xlu0.b32.end [16/16] %v1891, 128
        %v2007 = vpop.trf.xlu0
        %v2008 = vpop.trf.xlu0
        %v2009 = vpop.trf.xlu0
        %v2010 = vpop.trf.xlu0
        %v2011 = vpop.trf.xlu0
        %v2012 = vpop.trf.xlu0
        %v2013 = vpop.trf.xlu0
        %v2014 = vpop.trf.xlu0
        %v2015 = vpop.trf.xlu0
        %v2016 = vpop.trf.xlu0
        %v2017 = vpop.trf.xlu0
        %v2018 = vpop.trf.xlu0
        %v2019 = vpop.trf.xlu0
        %v2020 = vpop.trf.xlu0
        %v2021 = vpop.trf.xlu0
        %v2022 = vpop.trf.xlu0
        %2023 = vxpose.xlu0.b32.start [1/16] %v1896, 128
        %2024 = vxpose.xlu0.b32.cont [2/16] %v1899, 128
        %2025 = vxpose.xlu0.b32.cont [3/16] %v1904, 128
        %2026 = vxpose.xlu0.b32.cont [4/16] %v1907, 128
        %2027 = vxpose.xlu0.b32.cont [5/16] %v1912, 128
        %2028 = vxpose.xlu0.b32.cont [6/16] %v1915, 128
        %2029 = vxpose.xlu0.b32.cont [7/16] %v1920, 128
        %2030 = vxpose.xlu0.b32.cont [8/16] %v1923, 128
        %2031 = vxpose.xlu0.b32.cont [9/16] %v1928, 128
        %2032 = vxpose.xlu0.b32.cont [10/16] %v1931, 128
        %2033 = vxpose.xlu0.b32.cont [11/16] %v1936, 128
        %2034 = vxpose.xlu0.b32.cont [12/16] %v1939, 128
        %2035 = vxpose.xlu0.b32.cont [13/16] %v1944, 128
        %2036 = vxpose.xlu0.b32.cont [14/16] %v1947, 128
        %2037 = vxpose.xlu0.b32.cont [15/16] %v1952, 128
        %2038 = vxpose.xlu0.b32.end [16/16] %v1955, 128
        %v2039 = vpop.trf.xlu0
        %v2040 = vpop.trf.xlu0
        %v2041 = vpop.trf.xlu0
        %v2042 = vpop.trf.xlu0
        %v2043 = vpop.trf.xlu0
        %v2044 = vpop.trf.xlu0
        %v2045 = vpop.trf.xlu0
        %v2046 = vpop.trf.xlu0
        %v2047 = vpop.trf.xlu0
        %v2048 = vpop.trf.xlu0
        %v2049 = vpop.trf.xlu0
        %v2050 = vpop.trf.xlu0
        %v2051 = vpop.trf.xlu0
        %v2052 = vpop.trf.xlu0
        %v2053 = vpop.trf.xlu0
        %v2054 = vpop.trf.xlu0
        %v2057 = vcombine.low %v2007, %v2039
        %v2059 = vunpack.c.l.s4 1983009808
        %v2060 = vunpack.c.0.s8 %v2059
        %v2061 = vlaneseq
        %v2062 = vshrl.u32 %v2061, 7
        %v2063 = vsub.s32 %v2060, %v2062
        %v2064 = vrot.slane %v2057, %v2063
        %2066 = vst [vmem:[%s354] sm:$0xf] %v2064
        %s2067 = sand.u32 %s196, 1
        %s2068 = scalar_lea.sflag [#allocation4], %s2067
        %s2069 = sand.u32 %s196, 1
        %s2070 = smul.addr %s2069, 4
        %s2071 = scalar_lea.vmem [#allocation5], %s2070
        %p2072 = scmp.lt.s32.totalorder %s26, 1
        %s2073 = scalar_select %p2072, %s26, 1
        %s2074 = smul.addr %s2073, 32
        %s2075 = smul.addr %s2074, 8
        %s2076 = scalar_lea.vmem %s8, %s2075
        // Predicated region
        $region53: #{tpu_custom_call.1} parent=47 // pred_check
          %p2077 = pneg %p206
        $region54: #{tpu_custom_call.1} parent=47 // pred_check_branch
          %2079 = sbr.rel (%p2077) target = $region56
        $region55: #{tpu_custom_call.1} parent=47 // pred_region
          %s2081 = ssub.s32 64, 64
          %2082 = vsyncadd %s2068, %s2081
          %s2083 = smul.addr %s26, 2
          %s2084 = smul.addr %s2083, 32
          %s2085 = scalar_lea.hbm %s7, %s2084
          %s2087 = sshll.u32 %s2071, 4
          %s2088 = int_to_ptr.vmem [resolvable:$true] %s2087
          %2090 = dma.vmem_to_hbm [thread:$0]  %s2088, 64, %s2085, %s2068
        $region56: #{tpu_custom_call.1} parent=47 // pred_fallthru
          _
        // Predicated region
        $region57: #{tpu_custom_call.1} parent=47 // pred_check
          %p2091 = pneg %p232
        $region58: #{tpu_custom_call.1} parent=47 // pred_check_branch
          %2093 = sbr.rel (%p2091) target = $region60
        $region59: #{tpu_custom_call.1} parent=47 // pred_region
          _
        $region60: #{tpu_custom_call.1} parent=47 // pred_fallthru
          _
      $region48: #{tpu_custom_call.1} parent=5 // pred_fallthru
        _
      %p2094 = scmp.le.s32.totalorder 2, %s21
      // Predicated region
      $region61: #{tpu_custom_call.1} parent=5 // pred_check
        %p2095 = pneg %p2094
      $region62: #{tpu_custom_call.1} parent=5 // pred_check_branch
        %2097 = sbr.rel (%p2095) target = $region64
      $region63: #{tpu_custom_call.1} parent=5 // pred_region
        %s2098 = ssub.s32 %s21, 2
        // Predicated region
        $region65: #{tpu_custom_call.1} parent=63 // pred_check
          %p2099 = pneg %p212
        $region66: #{tpu_custom_call.1} parent=63 // pred_check_branch
          %2101 = sbr.rel (%p2099) target = $region68
        $region67: #{tpu_custom_call.1} parent=63 // pred_region
          %s2102 = sand.u32 %s197, 1
          %s2103 = scalar_lea.sflag [#allocation4], %s2102
          %s2104 = sand.u32 %s197, 1
          %s2105 = smul.addr %s2104, 4
          %s2106 = scalar_lea.vmem [#allocation5], %s2105
          %2107 = dma.done %s2103, 64
        $region68: #{tpu_custom_call.1} parent=63 // pred_fallthru
          _
        // Predicated region
        $region69: #{tpu_custom_call.1} parent=63 // pred_check
          %p2108 = pneg %p238
        $region70: #{tpu_custom_call.1} parent=63 // pred_check_branch
          %2110 = sbr.rel (%p2108) target = $region72
        $region71: #{tpu_custom_call.1} parent=63 // pred_region
          %p2111 = scmp.lt.s32.totalorder %s27, 1
          %s2112 = scalar_select %p2111, %s27, 1
          %s2113 = smul.addr %s2112, 32
          %s2114 = smul.addr %s2113, 8
          %s2115 = scalar_lea.vmem %s8, %s2114
        $region72: #{tpu_custom_call.1} parent=63 // pred_fallthru
          _
      $region64: #{tpu_custom_call.1} parent=5 // pred_fallthru
        _
    $region6: #{tpu_custom_call.1} parent=1 // loop_footer
      %s25 = sadd.s32 1, %s21
    $region7: #{tpu_custom_call.1} parent=1 // loop_footer_branch
      %20 = sbr.rel target = $region3
    $region8: #{tpu_custom_call.1} parent=1 // loop_exit
      _
    %2116 = vsyncpa [#allocation3], 1
    %s2117 = scalar_lea.sflag [#allocation3], 1
    %2118 = vsyncpa %s2117, 1
    %2119 = vsyncpa [#allocation4], 1
    %s2120 = scalar_lea.sflag [#allocation4], 1
    %2121 = vsyncpa %s2120, 1

</llo_original>
